<compile_context>
chip_gen: v6e
topology: v6e:2x2x1
jax: 0.10.0
libtpu: 0.0.40
codegen_flags: <defaults>
</compile_context>

<pallas_src>
import math

import jax
import jax.numpy as jnp
from jax.experimental import pallas as pl
from jax.experimental.pallas import tpu as pltpu

LANE = 128
_NEG_INF = -1e30


def _round_up(x, m):
    return ((x + m - 1) // m) * m


def _pick_batch_block(batch):
    """Batch rows per grid step.  Prefer batching a few rows together, but
    keep >= 2 grid steps (v7x has 2 TensorCores; a single 'parallel' step
    would leave one idle).  No-op trade-off on v5e/v6e (1 TC)."""
    for bb in (4, 3, 2, 1):
        if batch % bb == 0 and (batch // bb >= 2 or batch == 1):
            return bb
    return 1


def fuse_qkv_weight(qkv_weight, num_heads):
    """Build the fused, transposed, scale-folded, bf16 QKV weight ONCE.

    qkv_weight: (3D, D) torch nn.Linear layout (out_features, in_features).
    Returns (D, 3D) bf16 = [Wq / sqrt(dh) | Wk | Wv], ready for x @ W.
    """
    three_d, d = qkv_weight.shape
    assert three_d == 3 * d
    scale = math.sqrt(d / num_heads)            # == sqrt(head_dim) == scalar_norm
    wq = qkv_weight[0 * d:1 * d, :].T / scale   # fold 1/sqrt(dh) into q columns
    wk = qkv_weight[1 * d:2 * d, :].T
    wv = qkv_weight[2 * d:3 * d, :].T
    return jnp.concatenate([wq, wk, wv], axis=1).astype(jnp.bfloat16)  # (D, 3D)


def make_mhsa_kernel(num_heads, head_dim, seq_len, seq_pad, batch_block):
    H, dh = num_heads, head_dim
    D = H * dh
    N, Np, bb = seq_len, seq_pad, batch_block

    def mhsa_kernel(x_ref, w_ref, o_ref, out_sc):
        # x_ref : (bb, Np, D) bf16       padded batch slab
        # w_ref : (D, 3D)     bf16       fused [Wq/sqrt(dh) | Wk | Wv], resident
        # o_ref : (bb, Np, D) out dtype  lane-dense output slab (final layout)
        # out_sc: (Np, D)     f32        per-row head-output scratch
        w = w_ref[...]

        # One wide fused QKV projection for all bb batch rows on the MXU:
        # (bb*Np, D) @ (D, 3D), bf16 operands, f32 accumulation.
        if bb == 1:
            x2 = x_ref[0]
        else:
            x2 = x_ref[...].reshape(bb * Np, D)
        qkv = jnp.dot(x2, w, preferred_element_type=jnp.float32)   # (bb*Np, 3D)

        # Key-padding bias (compile-time constant; hoisted out of the loops).
        if Np != N:
            col = jax.lax.broadcasted_iota(jnp.int32, (1, Np), 1)
            key_bias = jnp.where(col < N, 0.0, _NEG_INF).astype(jnp.float32)
        else:
            key_bias = None

        for b in range(bb):                        # static, small
            qkv_b = qkv if bb == 1 else qkv[b * Np:(b + 1) * Np]    # (Np, 3D)
            for h in range(H):                     # static, small
                q = qkv_b[:, h * dh:(h + 1) * dh]                   # pre-scaled
                k = qkv_b[:, D + h * dh:D + (h + 1) * dh]
                v = qkv_b[:, 2 * D + h * dh:2 * D + (h + 1) * dh]

                # scores = q @ k^T: contract dh directly (no .T relayout),
                # bf16 operands -> f32 accumulation on the MXU.
                s = jax.lax.dot_general(
                    q.astype(jnp.bfloat16), k.astype(jnp.bfloat16),
                    dimension_numbers=(((1,), (1,)), ((), ())),
                    preferred_element_type=jnp.float32)             # (Np, Np)
                if key_bias is not None:
                    s = s + key_bias               # mask padded key columns

                # Numerically-stable softmax, all f32 (v5e VPU/EUP lack bf16);
                # denominator reciprocal goes to the EUP slot.
                s = s - jnp.max(s, axis=-1, keepdims=True)
                p = jnp.exp(s)
                p = p * pl.reciprocal(jnp.sum(p, axis=-1, keepdims=True),
                                      approx=True)

                # Head output written straight into its D-columns of the
                # scratch: no jnp.concatenate relayout, values freed early.
                out_sc[:, h * dh:(h + 1) * dh] = jnp.dot(
                    p.astype(jnp.bfloat16), v.astype(jnp.bfloat16),
                    preferred_element_type=jnp.float32)

            # One lane-dense (Np, D) store per batch row, already in the
            # module's final (B, N, D) layout.
            o_ref[b] = out_sc[...].astype(o_ref.dtype)

    return mhsa_kernel


def multi_head_self_attention(x, w_fused, num_heads):
    """x: (B, N, D); w_fused: (D, 3D) bf16 from fuse_qkv_weight (built once)."""
    B, N, D = x.shape
    H = num_heads
    dh = D // H
    assert H * dh == D and w_fused.shape == (D, 3 * D)

    Np = _round_up(N, LANE)        # lane-dense scores / softmax reductions / p@v
    bb = _pick_batch_block(B)
    out_dtype = x.dtype

    xb = x.astype(jnp.bfloat16)
    if Np != N:
        xb = jnp.pad(xb, ((0, 0), (0, Np - N), (0, 0)))

    # Working-set based scoped-VMEM limit (the v5e default of 16 MiB is too
    # small at production D); clamp to [32 MiB, 64 MiB] so it also fits v7x.
    out_bytes = jnp.dtype(out_dtype).itemsize
    est = (D * 3 * D * 2                        # resident bf16 weight, 1 buffer
           + 2 * bb * Np * D * 2                # x block, double-buffered bf16
           + 2 * bb * Np * D * out_bytes        # out block, double-buffered
           + bb * Np * 3 * D * 4                # qkv f32 temp
           + 2 * Np * Np * 4                    # scores + probabilities, f32
           + Np * D * 4)                        # head-output scratch
    vmem_limit = int(min(64 * 1024 * 1024, max(32 * 1024 * 1024, 2 * est)))

    kernel = make_mhsa_kernel(H, dh, N, Np, bb)

    out = pl.pallas_call(
        kernel,
        out_shape=jax.ShapeDtypeStruct((B, Np, D), out_dtype),
        grid_spec=pltpu.PrefetchScalarGridSpec(
            num_scalar_prefetch=0,
            grid=(B // bb,),
            in_specs=[
                pl.BlockSpec((bb, Np, D), lambda i: (i, 0, 0)),
                # Constant index_map + single buffer: the fused weight is
                # DMA'd once and stays resident in VMEM (no dead 2nd buffer).
                pl.BlockSpec((D, 3 * D), lambda i: (0, 0),
                             pipeline_mode=pl.Buffered(1)),
            ],
            out_specs=pl.BlockSpec((bb, Np, D), lambda i: (i, 0, 0)),
            scratch_shapes=[pltpu.VMEM((Np, D), jnp.float32)],
        ),
        compiler_params=pltpu.CompilerParams(
            dimension_semantics=("parallel",),
            vmem_limit_bytes=vmem_limit),
    )(xb, w_fused)

    return out[:, :N, :] if Np != N else out


def reference_mhsa(x, qkv_weight, num_heads):
    B, N, D = x.shape
    H = num_heads
    dh = D // H
    scale = math.sqrt(D / H)
    qkv = jnp.einsum('bnd,ed->bne', x, qkv_weight)   # (B, N, 3D)
    q, k, v = jnp.split(qkv, 3, axis=-1)
    q = q.reshape(B, N, H, dh).transpose(0, 2, 1, 3)
    k = k.reshape(B, N, H, dh).transpose(0, 2, 1, 3)
    v = v.reshape(B, N, H, dh).transpose(0, 2, 1, 3)
    attn = jax.nn.softmax(jnp.einsum('bhik,bhjk->bhij', q, k) / scale, axis=-1)
    out = jnp.einsum('bhij,bhjk->bhik', attn, v)
    return out.transpose(0, 2, 1, 3).reshape(B, N, D)


if __name__ == "__main__":
    B, N, D, H = 2, 8, 32, 4

    key = jax.random.PRNGKey(0)
    kx, kw = jax.random.split(key)

    x = jax.random.normal(kx, (B, N, D), dtype=jnp.float32)

    # xavier_uniform_ on a (3D, D) weight: fan_in = D, fan_out = 3D.
    bound = math.sqrt(6.0 / (D + 3 * D))
    qkv_weight = jax.random.uniform(
        kw, (3 * D, D), dtype=jnp.float32, minval=-bound, maxval=bound)

    w_fused = fuse_qkv_weight(qkv_weight, H)     # built once, reused per call

    out = multi_head_self_attention(x, w_fused, num_heads=H)
    out = jax.block_until_ready(out)
    assert out.shape == (B, N, D)

    ref = reference_mhsa(x, qkv_weight, num_heads=H)
    # MXU operands are bf16 (with f32 accumulation + f32 softmax) and the
    # softmax denominator uses the EUP approximate reciprocal, while the
    # reference is pure f32 — hence the relaxed tolerance.
    err = float(jnp.max(jnp.abs(out - ref)))
    assert jnp.allclose(out, ref, atol=5e-2, rtol=5e-2), err

    print("KERNEL_OK")
</pallas_src>

<mosaic_0001>
module attributes {stable_mosaic.version = 11 : i64} {
  func.func @mhsa_kernel(%arg0: i32, %arg1: memref<1x128x32xbf16, #tpu.memory_space<vmem>>, %arg2: memref<32x96xbf16, #tpu.memory_space<vmem>>, %arg3: memref<1x128x32xf32, #tpu.memory_space<vmem>>, %arg4: memref<128x32xf32, #tpu.memory_space<vmem>>) attributes {dimension_semantics = [#tpu.dimension_semantics<parallel>], iteration_bounds = array<i64: 2>, scalar_prefetch = 0 : i64, scratch_operands = 1 : i64, tpu.core_type = #tpu.core_type<tc>, window_params = [{transform_indices = @transform_0, window_bounds = array<i64: 1, 128, 32>}, {pipeline_mode = #tpu.pipeline_mode<synchronous>, transform_indices = @transform_1, window_bounds = array<i64: 32, 96>}, {transform_indices = @transform_2, window_bounds = array<i64: 1, 128, 32>}]} {
    %c0 = arith.constant 0 : index
    %c0_0 = arith.constant 0 : index
    %0 = vector.load %arg2[%c0, %c0_0] : memref<32x96xbf16, #tpu.memory_space<vmem>>, vector<32x96xbf16>
    %c0_1 = arith.constant 0 : index
    %c0_2 = arith.constant 0 : index
    %c0_3 = arith.constant 0 : index
    %1 = vector.load %arg1[%c0_1, %c0_2, %c0_3] : memref<1x128x32xbf16, #tpu.memory_space<vmem>>, vector<1x128x32xbf16>
    %2 = vector.shape_cast %1 : vector<1x128x32xbf16> to vector<128x32xbf16>
    %cst = arith.constant dense<0.000000e+00> : vector<128x96xf32>
    %3 = tpu.matmul %2, %0, %cst {dimension_numbers = #tpu.dot_dimension_numbers<[1], [0], [0], [1], [0, 0, 1, 1], [], []>} : vector<128x32xbf16>, vector<32x96xbf16>, vector<128x96xf32> -> vector<128x96xf32>
    %4 = tpu.iota {dimensions = array<i32: 1>} : vector<1x128xi32>
    %c8_i32 = arith.constant 8 : i32
    %5 = vector.broadcast %c8_i32 : i32 to vector<1x128xi32>
    %6 = arith.cmpi slt, %4, %5 : vector<1x128xi32>
    %cst_4 = arith.constant 0.000000e+00 : f32
    %cst_5 = arith.constant -1.000000e+30 : f32
    %7 = vector.broadcast %cst_4 : f32 to vector<1x128xf32>
    %8 = vector.broadcast %cst_5 : f32 to vector<1x128xf32>
    %9 = arith.select %6, %7, %8 : vector<1x128xi1>, vector<1x128xf32>
    %10 = vector.extract_strided_slice %3 {offsets = [0, 0], sizes = [128, 8], strides = [1, 1]} : vector<128x96xf32> to vector<128x8xf32>
    %11 = vector.extract_strided_slice %3 {offsets = [0, 32], sizes = [128, 8], strides = [1, 1]} : vector<128x96xf32> to vector<128x8xf32>
    %12 = vector.extract_strided_slice %3 {offsets = [0, 64], sizes = [128, 8], strides = [1, 1]} : vector<128x96xf32> to vector<128x8xf32>
    %13 = arith.truncf %10 : vector<128x8xf32> to vector<128x8xbf16>
    %14 = arith.truncf %11 : vector<128x8xf32> to vector<128x8xbf16>
    %cst_6 = arith.constant dense<0.000000e+00> : vector<128x128xf32>
    %15 = tpu.matmul %13, %14, %cst_6 {dimension_numbers = #tpu.dot_dimension_numbers<[1], [1], [0], [0], [0, 0, 1, 0], [], []>} : vector<128x8xbf16>, vector<128x8xbf16>, vector<128x128xf32> -> vector<128x128xf32>
    %16 = vector.broadcast %9 : vector<1x128xf32> to vector<128x128xf32>
    %17 = arith.addf %15, %16 : vector<128x128xf32>
    %cst_7 = arith.constant dense<0xFF800000> : vector<128xf32>
    %18 = vector.multi_reduction <maximumf>, %17, %cst_7 [1] : vector<128x128xf32> to vector<128xf32>
    %19 = vector.shape_cast %18 : vector<128xf32> to vector<128x1xf32>
    %20 = vector.broadcast %19 : vector<128x1xf32> to vector<128x128xf32>
    %21 = arith.subf %17, %20 : vector<128x128xf32>
    %22 = math.exp %21 : vector<128x128xf32>
    %cst_8 = arith.constant dense<0.000000e+00> : vector<128xf32>
    %23 = vector.multi_reduction <add>, %22, %cst_8 [1] : vector<128x128xf32> to vector<128xf32>
    %24 = vector.shape_cast %23 : vector<128xf32> to vector<128x1xf32>
    %25 = tpu.reciprocal %24 {approx = true} : vector<128x1xf32> -> vector<128x1xf32>
    %26 = vector.broadcast %25 : vector<128x1xf32> to vector<128x128xf32>
    %27 = arith.mulf %22, %26 : vector<128x128xf32>
    %28 = arith.truncf %27 : vector<128x128xf32> to vector<128x128xbf16>
    %29 = arith.truncf %12 : vector<128x8xf32> to vector<128x8xbf16>
    %cst_9 = arith.constant dense<0.000000e+00> : vector<128x8xf32>
    %30 = tpu.matmul %28, %29, %cst_9 {dimension_numbers = #tpu.dot_dimension_numbers<[1], [0], [0], [1], [0, 0, 1, 1], [], []>} : vector<128x128xbf16>, vector<128x8xbf16>, vector<128x8xf32> -> vector<128x8xf32>
    %c0_10 = arith.constant 0 : index
    %c0_11 = arith.constant 0 : index
    %31 = vector.load %arg4[%c0_10, %c0_11] : memref<128x32xf32, #tpu.memory_space<vmem>>, vector<128x8xf32>
    tpu.vector_store %arg4[%c0_10, %c0_11], %30 {strides = array<i32>} : memref<128x32xf32, #tpu.memory_space<vmem>>, vector<128x8xf32>,
    %32 = vector.extract_strided_slice %3 {offsets = [0, 8], sizes = [128, 8], strides = [1, 1]} : vector<128x96xf32> to vector<128x8xf32>
    %33 = vector.extract_strided_slice %3 {offsets = [0, 40], sizes = [128, 8], strides = [1, 1]} : vector<128x96xf32> to vector<128x8xf32>
    %34 = vector.extract_strided_slice %3 {offsets = [0, 72], sizes = [128, 8], strides = [1, 1]} : vector<128x96xf32> to vector<128x8xf32>
    %35 = arith.truncf %32 : vector<128x8xf32> to vector<128x8xbf16>
    %36 = arith.truncf %33 : vector<128x8xf32> to vector<128x8xbf16>
    %cst_12 = arith.constant dense<0.000000e+00> : vector<128x128xf32>
    %37 = tpu.matmul %35, %36, %cst_12 {dimension_numbers = #tpu.dot_dimension_numbers<[1], [1], [0], [0], [0, 0, 1, 0], [], []>} : vector<128x8xbf16>, vector<128x8xbf16>, vector<128x128xf32> -> vector<128x128xf32>
    %38 = vector.broadcast %9 : vector<1x128xf32> to vector<128x128xf32>
    %39 = arith.addf %37, %38 : vector<128x128xf32>
    %cst_13 = arith.constant dense<0xFF800000> : vector<128xf32>
    %40 = vector.multi_reduction <maximumf>, %39, %cst_13 [1] : vector<128x128xf32> to vector<128xf32>
    %41 = vector.shape_cast %40 : vector<128xf32> to vector<128x1xf32>
    %42 = vector.broadcast %41 : vector<128x1xf32> to vector<128x128xf32>
    %43 = arith.subf %39, %42 : vector<128x128xf32>
    %44 = math.exp %43 : vector<128x128xf32>
    %cst_14 = arith.constant dense<0.000000e+00> : vector<128xf32>
    %45 = vector.multi_reduction <add>, %44, %cst_14 [1] : vector<128x128xf32> to vector<128xf32>
    %46 = vector.shape_cast %45 : vector<128xf32> to vector<128x1xf32>
    %47 = tpu.reciprocal %46 {approx = true} : vector<128x1xf32> -> vector<128x1xf32>
    %48 = vector.broadcast %47 : vector<128x1xf32> to vector<128x128xf32>
    %49 = arith.mulf %44, %48 : vector<128x128xf32>
    %50 = arith.truncf %49 : vector<128x128xf32> to vector<128x128xbf16>
    %51 = arith.truncf %34 : vector<128x8xf32> to vector<128x8xbf16>
    %cst_15 = arith.constant dense<0.000000e+00> : vector<128x8xf32>
    %52 = tpu.matmul %50, %51, %cst_15 {dimension_numbers = #tpu.dot_dimension_numbers<[1], [0], [0], [1], [0, 0, 1, 1], [], []>} : vector<128x128xbf16>, vector<128x8xbf16>, vector<128x8xf32> -> vector<128x8xf32>
    %c0_16 = arith.constant 0 : index
    %c8 = arith.constant 8 : index
    %53 = vector.load %arg4[%c0_16, %c8] : memref<128x32xf32, #tpu.memory_space<vmem>>, vector<128x8xf32>
    tpu.vector_store %arg4[%c0_16, %c8], %52 {strides = array<i32>} : memref<128x32xf32, #tpu.memory_space<vmem>>, vector<128x8xf32>,
    %54 = vector.extract_strided_slice %3 {offsets = [0, 16], sizes = [128, 8], strides = [1, 1]} : vector<128x96xf32> to vector<128x8xf32>
    %55 = vector.extract_strided_slice %3 {offsets = [0, 48], sizes = [128, 8], strides = [1, 1]} : vector<128x96xf32> to vector<128x8xf32>
    %56 = vector.extract_strided_slice %3 {offsets = [0, 80], sizes = [128, 8], strides = [1, 1]} : vector<128x96xf32> to vector<128x8xf32>
    %57 = arith.truncf %54 : vector<128x8xf32> to vector<128x8xbf16>
    %58 = arith.truncf %55 : vector<128x8xf32> to vector<128x8xbf16>
    %cst_17 = arith.constant dense<0.000000e+00> : vector<128x128xf32>
    %59 = tpu.matmul %57, %58, %cst_17 {dimension_numbers = #tpu.dot_dimension_numbers<[1], [1], [0], [0], [0, 0, 1, 0], [], []>} : vector<128x8xbf16>, vector<128x8xbf16>, vector<128x128xf32> -> vector<128x128xf32>
    %60 = vector.broadcast %9 : vector<1x128xf32> to vector<128x128xf32>
    %61 = arith.addf %59, %60 : vector<128x128xf32>
    %cst_18 = arith.constant dense<0xFF800000> : vector<128xf32>
    %62 = vector.multi_reduction <maximumf>, %61, %cst_18 [1] : vector<128x128xf32> to vector<128xf32>
    %63 = vector.shape_cast %62 : vector<128xf32> to vector<128x1xf32>
    %64 = vector.broadcast %63 : vector<128x1xf32> to vector<128x128xf32>
    %65 = arith.subf %61, %64 : vector<128x128xf32>
    %66 = math.exp %65 : vector<128x128xf32>
    %cst_19 = arith.constant dense<0.000000e+00> : vector<128xf32>
    %67 = vector.multi_reduction <add>, %66, %cst_19 [1] : vector<128x128xf32> to vector<128xf32>
    %68 = vector.shape_cast %67 : vector<128xf32> to vector<128x1xf32>
    %69 = tpu.reciprocal %68 {approx = true} : vector<128x1xf32> -> vector<128x1xf32>
    %70 = vector.broadcast %69 : vector<128x1xf32> to vector<128x128xf32>
    %71 = arith.mulf %66, %70 : vector<128x128xf32>
    %72 = arith.truncf %71 : vector<128x128xf32> to vector<128x128xbf16>
    %73 = arith.truncf %56 : vector<128x8xf32> to vector<128x8xbf16>
    %cst_20 = arith.constant dense<0.000000e+00> : vector<128x8xf32>
    %74 = tpu.matmul %72, %73, %cst_20 {dimension_numbers = #tpu.dot_dimension_numbers<[1], [0], [0], [1], [0, 0, 1, 1], [], []>} : vector<128x128xbf16>, vector<128x8xbf16>, vector<128x8xf32> -> vector<128x8xf32>
    %c0_21 = arith.constant 0 : index
    %c16 = arith.constant 16 : index
    %75 = vector.load %arg4[%c0_21, %c16] : memref<128x32xf32, #tpu.memory_space<vmem>>, vector<128x8xf32>
    tpu.vector_store %arg4[%c0_21, %c16], %74 {strides = array<i32>} : memref<128x32xf32, #tpu.memory_space<vmem>>, vector<128x8xf32>,
    %76 = vector.extract_strided_slice %3 {offsets = [0, 24], sizes = [128, 8], strides = [1, 1]} : vector<128x96xf32> to vector<128x8xf32>
    %77 = vector.extract_strided_slice %3 {offsets = [0, 56], sizes = [128, 8], strides = [1, 1]} : vector<128x96xf32> to vector<128x8xf32>
    %78 = vector.extract_strided_slice %3 {offsets = [0, 88], sizes = [128, 8], strides = [1, 1]} : vector<128x96xf32> to vector<128x8xf32>
    %79 = arith.truncf %76 : vector<128x8xf32> to vector<128x8xbf16>
    %80 = arith.truncf %77 : vector<128x8xf32> to vector<128x8xbf16>
    %cst_22 = arith.constant dense<0.000000e+00> : vector<128x128xf32>
    %81 = tpu.matmul %79, %80, %cst_22 {dimension_numbers = #tpu.dot_dimension_numbers<[1], [1], [0], [0], [0, 0, 1, 0], [], []>} : vector<128x8xbf16>, vector<128x8xbf16>, vector<128x128xf32> -> vector<128x128xf32>
    %82 = vector.broadcast %9 : vector<1x128xf32> to vector<128x128xf32>
    %83 = arith.addf %81, %82 : vector<128x128xf32>
    %cst_23 = arith.constant dense<0xFF800000> : vector<128xf32>
    %84 = vector.multi_reduction <maximumf>, %83, %cst_23 [1] : vector<128x128xf32> to vector<128xf32>
    %85 = vector.shape_cast %84 : vector<128xf32> to vector<128x1xf32>
    %86 = vector.broadcast %85 : vector<128x1xf32> to vector<128x128xf32>
    %87 = arith.subf %83, %86 : vector<128x128xf32>
    %88 = math.exp %87 : vector<128x128xf32>
    %cst_24 = arith.constant dense<0.000000e+00> : vector<128xf32>
    %89 = vector.multi_reduction <add>, %88, %cst_24 [1] : vector<128x128xf32> to vector<128xf32>
    %90 = vector.shape_cast %89 : vector<128xf32> to vector<128x1xf32>
    %91 = tpu.reciprocal %90 {approx = true} : vector<128x1xf32> -> vector<128x1xf32>
    %92 = vector.broadcast %91 : vector<128x1xf32> to vector<128x128xf32>
    %93 = arith.mulf %88, %92 : vector<128x128xf32>
    %94 = arith.truncf %93 : vector<128x128xf32> to vector<128x128xbf16>
    %95 = arith.truncf %78 : vector<128x8xf32> to vector<128x8xbf16>
    %cst_25 = arith.constant dense<0.000000e+00> : vector<128x8xf32>
    %96 = tpu.matmul %94, %95, %cst_25 {dimension_numbers = #tpu.dot_dimension_numbers<[1], [0], [0], [1], [0, 0, 1, 1], [], []>} : vector<128x128xbf16>, vector<128x8xbf16>, vector<128x8xf32> -> vector<128x8xf32>
    %c0_26 = arith.constant 0 : index
    %c24 = arith.constant 24 : index
    %97 = vector.load %arg4[%c0_26, %c24] : memref<128x32xf32, #tpu.memory_space<vmem>>, vector<128x8xf32>
    tpu.vector_store %arg4[%c0_26, %c24], %96 {strides = array<i32>} : memref<128x32xf32, #tpu.memory_space<vmem>>, vector<128x8xf32>,
    %c0_27 = arith.constant 0 : index
    %c0_28 = arith.constant 0 : index
    %98 = vector.load %arg4[%c0_27, %c0_28] : memref<128x32xf32, #tpu.memory_space<vmem>>, vector<128x32xf32>
    %c0_29 = arith.constant 0 : index
    %c0_30 = arith.constant 0 : index
    %c0_31 = arith.constant 0 : index
    %99 = vector.load %arg3[%c0_29, %c0_30, %c0_31] : memref<1x128x32xf32, #tpu.memory_space<vmem>>, vector<1x128x32xf32>
    %100 = vector.shape_cast %99 : vector<1x128x32xf32> to vector<128x32xf32>
    %101 = vector.shape_cast %98 : vector<128x32xf32> to vector<1x128x32xf32>
    tpu.vector_store %arg3[%c0_29, %c0_30, %c0_31], %101 {strides = array<i32>} : memref<1x128x32xf32, #tpu.memory_space<vmem>>, vector<1x128x32xf32>,
    return
  }
  func.func @transform_0(%arg0: i32) -> (i32, i32, i32) {
    %c0_i32 = arith.constant 0 : i32
    %c0_i32_0 = arith.constant 0 : i32
    %c0_i32_1 = arith.constant 0 : i32
    return %arg0, %c0_i32, %c0_i32_0 : i32, i32, i32
  }
  func.func @transform_1(%arg0: i32) -> (i32, i32) {
    %c0_i32 = arith.constant 0 : i32
    %c0_i32_0 = arith.constant 0 : i32
    %c0_i32_1 = arith.constant 0 : i32
    return %c0_i32, %c0_i32_0 : i32, i32
  }
  func.func @transform_2(%arg0: i32) -> (i32, i32, i32) {
    %c0_i32 = arith.constant 0 : i32
    %c0_i32_0 = arith.constant 0 : i32
    %c0_i32_1 = arith.constant 0 : i32
    return %arg0, %c0_i32, %c0_i32_0 : i32, i32, i32
  }
}

</mosaic_0001>

<llo_original>
// kernel: tpu_custom_call.1
$region0: #{tpu_custom_call.1}
  #allocation0 [shape = 'u32[]', space=smem, size = 0x4, offset = 0x4, fixed_abs, tag = 'smem constant byte address 0x4 - core index']
  #allocation1 [shape = 'u32[144,128]{1,0:T(1,128)}', space=vmem, size = 0x12000, scoped, tag = 'internal scratch']
  #allocation2 [shape = 'f32[128,32]{1,0:T(8,128)}', space=vmem, size = 0x10000, scoped, tag = 'scratch operand']
  %s0 = inlined_call_operand.vmem [shape: bf16[2,128,32], index: 0, kind: input, shape index: {}]
  %s1 = inlined_call_operand.vmem [shape: bf16[32,96], index: 1, kind: input, shape index: {}]
  %s2 = inlined_call_operand.vmem [shape: f32[2,128,32], index: 2, kind: output, shape index: {}]
  %s3 = sld [smem:[#allocation0]]
  $region41: #{tpu_custom_call.1} parent=0
    _
  %s5 = ssub.s32 1, %s3
  %s6 = scalar_select 0, %s5, %s3
  loop: start=0, step=1, limit=4
  $region2: #{tpu_custom_call.1} parent=0 // loop_pre_header
    _
  $region3: #{tpu_custom_call.1} parent=0 // loop_header
    %s8 = sphi 0, %s12
    %p9 = scmp.ge.s32.totalorder %s8, 4
    %s18 = sphi 0, %s20
    %s21 = sphi 0, %s18
    %s22 = sphi 0, %s21
    %s38 = sphi 0, %s22
    %s42 = sphi 0, %s42
    %s44 = sphi 0, %s42
    %s45 = sphi 0, %s44
    %s59 = sphi 0, %s45
    %s65 = sphi 0, %s67
    %s68 = sphi 0, %s65
    %s69 = sphi 0, %s68
    %s85 = sphi 0, %s69
  $region4: #{tpu_custom_call.1} parent=0 // loop_header_branch
    %11 = sbr.rel (%p9) target = $region8
  $region5: #{tpu_custom_call.1} parent=0 // loop_body
    %s13 = ssub.s32 %s8, 1
    %s14 = ssub.s32 %s8, 2
    %s15 = sadd.s32 %s8, 1
    %s16 = ssub.s32 %s8, %s15
    %p17 = scmp.eq.s32.totalorder %s16, 0
    %s19 = sadd.s32 %s18, 1
    %s20 = scalar_select %p17, %s18, %s19
    %p23 = pneg %p17
    %p24 = scmp.eq.s32.totalorder %s8, 1
    %p25 = por %p23, %p24
    %p26 = scmp.ne.s32.totalorder %s18, %s21
    %p27 = scmp.eq.s32.totalorder %s8, 0
    %p28 = por %p26, %p27
    %p29 = scmp.ne.s32.totalorder %s18, %s21
    %p30 = scmp.eq.s32.totalorder %s13, 1
    %p31 = por %p29, %p30
    %p32 = scmp.ne.s32.totalorder %s21, %s22
    %p33 = scmp.eq.s32.totalorder %s13, 0
    %p34 = por %p32, %p33
    %p35 = scmp.ne.s32.totalorder %s21, %s22
    %p36 = scmp.eq.s32.totalorder %s14, 1
    %p37 = por %p35, %p36
    %p39 = scmp.ne.s32.totalorder %s22, %s38
    %p40 = scmp.eq.s32.totalorder %s14, 0
    %p41 = por %p39, %p40
    %s43 = sadd.s32 %s42, 1
    %p46 = scmp.eq.s32.totalorder %s8, 1
    %p47 = scmp.ne.s32.totalorder %s42, %s44
    %p48 = scmp.eq.s32.totalorder %s8, 0
    %p49 = por %p47, %p48
    %p50 = scmp.ne.s32.totalorder %s42, %s44
    %p51 = scmp.eq.s32.totalorder %s13, 1
    %p52 = por %p50, %p51
    %p53 = scmp.ne.s32.totalorder %s44, %s45
    %p54 = scmp.eq.s32.totalorder %s13, 0
    %p55 = por %p53, %p54
    %p56 = scmp.ne.s32.totalorder %s44, %s45
    %p57 = scmp.eq.s32.totalorder %s14, 1
    %p58 = por %p56, %p57
    %p60 = scmp.ne.s32.totalorder %s45, %s59
    %p61 = scmp.eq.s32.totalorder %s14, 0
    %p62 = por %p60, %p61
    %s63 = ssub.s32 %s8, %s15
    %p64 = scmp.eq.s32.totalorder %s63, 0
    %s66 = sadd.s32 %s65, 1
    %s67 = scalar_select %p64, %s65, %s66
    %p70 = pneg %p64
    %p71 = scmp.eq.s32.totalorder %s8, 1
    %p72 = por %p70, %p71
    %p73 = scmp.ne.s32.totalorder %s65, %s68
    %p74 = scmp.eq.s32.totalorder %s8, 0
    %p75 = por %p73, %p74
    %p76 = scmp.ne.s32.totalorder %s65, %s68
    %p77 = scmp.eq.s32.totalorder %s13, 1
    %p78 = por %p76, %p77
    %p79 = scmp.ne.s32.totalorder %s68, %s69
    %p80 = scmp.eq.s32.totalorder %s13, 0
    %p81 = por %p79, %p80
    %p82 = scmp.ne.s32.totalorder %s68, %s69
    %p83 = scmp.eq.s32.totalorder %s14, 1
    %p84 = por %p82, %p83
    %p86 = scmp.ne.s32.totalorder %s69, %s85
    %p87 = scmp.eq.s32.totalorder %s14, 0
    %p88 = por %p86, %p87
    %p89 = scmp.le.s32.totalorder 1, %s8
    %p90 = scmp.lt.s32.totalorder %s8, 3
    %p91 = pnand %p89, %p90
    %p92 = pneg %p91
    // Predicated region
    $region9: #{tpu_custom_call.1} parent=5 // pred_check
      _
    $region10: #{tpu_custom_call.1} parent=5 // pred_check_branch
      %94 = sbr.rel (%p91) target = $region12
    $region11: #{tpu_custom_call.1} parent=5 // pred_region
      %s95 = ssub.s32 %s8, 1
      // Predicated region
      $region13: #{tpu_custom_call.1} parent=11 // pred_check
        %p96 = pneg %p55
      $region14: #{tpu_custom_call.1} parent=11 // pred_check_branch
        %98 = sbr.rel (%p96) target = $region16
      $region15: #{tpu_custom_call.1} parent=11 // pred_region
        _
      $region16: #{tpu_custom_call.1} parent=11 // pred_fallthru
        _
    $region12: #{tpu_custom_call.1} parent=5 // pred_fallthru
      _
    %p99 = scmp.lt.s32.totalorder %s8, 2
    // Predicated region
    $region17: #{tpu_custom_call.1} parent=5 // pred_check
      %p100 = pneg %p99
    $region18: #{tpu_custom_call.1} parent=5 // pred_check_branch
      %102 = sbr.rel (%p100) target = $region20
    $region19: #{tpu_custom_call.1} parent=5 // pred_region
      // Predicated region
      $region21: #{tpu_custom_call.1} parent=19 // pred_check
        %p103 = pneg %p28
      $region22: #{tpu_custom_call.1} parent=19 // pred_check_branch
        %105 = sbr.rel (%p103) target = $region24
      $region23: #{tpu_custom_call.1} parent=19 // pred_region
        %p106 = scmp.lt.s32.totalorder %s8, 1
        %s107 = scalar_select %p106, %s8, 1
        %s108 = smul.addr %s107, 16
        %s109 = smul.addr %s108, 4
        %s110 = scalar_lea.vmem %s0, %s109
      $region24: #{tpu_custom_call.1} parent=19 // pred_fallthru
        _
    $region20: #{tpu_custom_call.1} parent=5 // pred_fallthru
      _
    %p111 = scmp.le.s32.totalorder 1, %s8
    %p112 = scmp.lt.s32.totalorder %s8, 3
    %p113 = pnand %p111, %p112
    %p114 = pneg %p113
    // Predicated region
    $region25: #{tpu_custom_call.1} parent=5 // pred_check
      _
    $region26: #{tpu_custom_call.1} parent=5 // pred_check_branch
      %116 = sbr.rel (%p113) target = $region28
    $region27: #{tpu_custom_call.1} parent=5 // pred_region
      %s117 = ssub.s32 %s8, 1
      %p118 = scmp.lt.s32.totalorder %s13, 1
      %s119 = scalar_select %p118, %s13, 1
      %s120 = smul.addr %s119, 16
      %s121 = smul.addr %s120, 4
      %s122 = scalar_lea.vmem %s0, %s121
      %p123 = pneg %p34
      %p124 = pneg %p31
      %p125 = pneg %p55
      %p126 = pneg %p52
      %p127 = pneg %p81
      %p128 = pneg %p78
      %p129 = scmp.lt.s32.totalorder %s13, 1
      %s130 = scalar_select %p129, %s13, 1
      %s131 = smul.addr %s130, 16
      %s132 = smul.addr %s131, 8
      %s133 = scalar_lea.vmem %s2, %s132
      %p134 = scmp.lt.s32.totalorder %s13, 1
      %s135 = scalar_select %p134, %s13, 1
      %s136 = smul.addr %s135, 16
      %s137 = smul.addr %s136, 4
      %s138 = scalar_lea.vmem %s0, %s137
      %p139 = scmp.lt.s32.totalorder %s13, 1
      %s140 = scalar_select %p139, %s13, 1
      %s141 = smul.addr %s140, 16
      %s142 = smul.addr %s141, 8
      %s143 = scalar_lea.vmem %s2, %s142
      %v145 = vld [vmem:[%s1] sm:$0xf]
      %v146 = vld [vmem:[%s1 + $0x4] sm:$0xf]
      %v147 = vld [vmem:[%s1 + $0x8] sm:$0xf]
      %v148 = vld [vmem:[%s1 + $0xc] sm:$0xf]
      %v149 = vld [vmem:[%s138] sm:$0xf]
      %v150 = vld [vmem:[%s138 + $0x4] sm:$0xf]
      %v151 = vld [vmem:[%s138 + $0x8] sm:$0xf]
      %v152 = vld [vmem:[%s138 + $0xc] sm:$0xf]
      %v153 = vld [vmem:[%s138 + $0x10] sm:$0xf]
      %v154 = vld [vmem:[%s138 + $0x14] sm:$0xf]
      %v155 = vld [vmem:[%s138 + $0x18] sm:$0xf]
      %v156 = vld [vmem:[%s138 + $0x1c] sm:$0xf]
      %v157 = vld [vmem:[%s138 + $0x20] sm:$0xf]
      %v158 = vld [vmem:[%s138 + $0x24] sm:$0xf]
      %v159 = vld [vmem:[%s138 + $0x28] sm:$0xf]
      %v160 = vld [vmem:[%s138 + $0x2c] sm:$0xf]
      %v161 = vld [vmem:[%s138 + $0x30] sm:$0xf]
      %v162 = vld [vmem:[%s138 + $0x34] sm:$0xf]
      %v163 = vld [vmem:[%s138 + $0x38] sm:$0xf]
      %v164 = vld [vmem:[%s138 + $0x3c] sm:$0xf]
      %v181 = vunpack.c.l.b16 %v149
      %v182 = vunpack.c.l.b16 %v150
      %v183 = vunpack.c.l.b16 %v151
      %v184 = vunpack.c.l.b16 %v152
      %v185 = vunpack.c.l.b16 %v153
      %v186 = vunpack.c.l.b16 %v154
      %v187 = vunpack.c.l.b16 %v155
      %v188 = vunpack.c.l.b16 %v156
      %v189 = vunpack.c.l.b16 %v157
      %v190 = vunpack.c.l.b16 %v158
      %v191 = vunpack.c.l.b16 %v159
      %v192 = vunpack.c.l.b16 %v160
      %v193 = vunpack.c.l.b16 %v161
      %v194 = vunpack.c.l.b16 %v162
      %v195 = vunpack.c.l.b16 %v163
      %v196 = vunpack.c.l.b16 %v164
      %v197 = vpack.c.b16 %v182, %v181
      %v198 = vpack.c.b16 %v184, %v183
      %v199 = vpack.c.b16 %v186, %v185
      %v200 = vpack.c.b16 %v188, %v187
      %v201 = vpack.c.b16 %v190, %v189
      %v202 = vpack.c.b16 %v192, %v191
      %v203 = vpack.c.b16 %v194, %v193
      %v204 = vpack.c.b16 %v196, %v195
      %v209 = vunpack.c.l.b16 %v145
      %v210 = vunpack.c.l.b16 %v146
      %v211 = vunpack.c.l.b16 %v147
      %v212 = vunpack.c.l.b16 %v148
      %v213 = vpack.c.b16 %v210, %v209
      %v214 = vpack.c.b16 %v212, %v211
      %vm217 = vcmask 261120
      %v219 = vsel %vm217, %v197, 0
      %v222 = vsel %vm217, %v198, 0
      %v225 = vsel %vm217, %v199, 0
      %v228 = vsel %vm217, %v200, 0
      %v231 = vsel %vm217, %v201, 0
      %v234 = vsel %vm217, %v202, 0
      %v237 = vsel %vm217, %v203, 0
      %v240 = vsel %vm217, %v204, 0
      %242 = vmatprep.subr.bf16.mxu0 0
      %243 = vmatpush1.bf16.msra.mxu0 0
      %244 = vmatprep.subr.bf16.mxu0 0
      %245 = vmatpush1.bf16.msra.mxu0 0
      %246 = vmatprep.subr.bf16.mxu0 0
      %247 = vmatpush1.bf16.msra.mxu0 0
      %248 = vmatprep.subr.bf16.mxu0 0
      %249 = vmatpush1.bf16.msra.mxu0 0
      %250 = vmatprep.subr.bf16.mxu0 0
      %251 = vmatpush1.bf16.msra.mxu0 0
      %252 = vmatprep.subr.bf16.mxu0 0
      %253 = vmatpush1.bf16.msra.mxu0 0
      %254 = vmatprep.subr.bf16.mxu0 0
      %255 = vmatpush1.bf16.msra.mxu0 %v214
      %256 = vmatprep.subr.bf16.mxu0 0
      %257 = vmatpush1.bf16.msra.mxu0 %v213
      %258 = vmatprep.subr.bf16.mxu0 0
      %259 = vmatpush2.bf16.msra.mxu0 0
      %260 = vmatprep.subr.bf16.mxu0 0
      %261 = vmatpush2.bf16.msra.mxu0 0
      %262 = vmatprep.subr.bf16.mxu0 0
      %263 = vmatpush2.bf16.msra.mxu0 0
      %264 = vmatprep.subr.bf16.mxu0 0
      %265 = vmatpush2.bf16.msra.mxu0 0
      %266 = vmatprep.subr.bf16.mxu0 0
      %267 = vmatpush2.bf16.msra.mxu0 0
      %268 = vmatprep.subr.bf16.mxu0 0
      %269 = vmatpush2.bf16.msra.mxu0 0
      %270 = vmatprep.subr.bf16.mxu0 0
      %271 = vmatpush2.bf16.msra.mxu0 0
      %272 = vmatprep.subr.bf16.mxu0 0
      %273 = vmatpush2.bf16.msra.mxu0 0
      %274 = vmatprep.mubr.bf16.mxu0 0
      %275 = vmatmul.mubr.bf16.gmra.mxu0 %v219
      %v276 = vpop.f32.mrf.mxu0
      %v277 = vadd.f32 0.0, %v276
      %v278 = vpop.f32.mrf.mxu0
      %v279 = vpop.f32.mrf.mxu0
      %v280 = vadd.f32 0.0, %v279
      %v281 = vpop.f32.mrf.mxu0
      %282 = vmatprep.mubr.bf16.mxu0 0
      %283 = vmatmul.mubr.bf16.gmra.mxu0 %v222
      %v284 = vpop.f32.mrf.mxu0
      %v285 = vadd.f32 0.0, %v284
      %v286 = vpop.f32.mrf.mxu0
      %v287 = vpop.f32.mrf.mxu0
      %v288 = vadd.f32 0.0, %v287
      %v289 = vpop.f32.mrf.mxu0
      %290 = vmatprep.mubr.bf16.mxu0 0
      %291 = vmatmul.mubr.bf16.gmra.mxu0 %v225
      %v292 = vpop.f32.mrf.mxu0
      %v293 = vadd.f32 0.0, %v292
      %v294 = vpop.f32.mrf.mxu0
      %v295 = vpop.f32.mrf.mxu0
      %v296 = vadd.f32 0.0, %v295
      %v297 = vpop.f32.mrf.mxu0
      %298 = vmatprep.mubr.bf16.mxu0 0
      %299 = vmatmul.mubr.bf16.gmra.mxu0 %v228
      %v300 = vpop.f32.mrf.mxu0
      %v301 = vadd.f32 0.0, %v300
      %v302 = vpop.f32.mrf.mxu0
      %v303 = vpop.f32.mrf.mxu0
      %v304 = vadd.f32 0.0, %v303
      %v305 = vpop.f32.mrf.mxu0
      %306 = vmatprep.mubr.bf16.mxu0 0
      %307 = vmatmul.mubr.bf16.gmra.mxu0 %v231
      %v308 = vpop.f32.mrf.mxu0
      %v309 = vadd.f32 0.0, %v308
      %v310 = vpop.f32.mrf.mxu0
      %v311 = vpop.f32.mrf.mxu0
      %v312 = vadd.f32 0.0, %v311
      %v313 = vpop.f32.mrf.mxu0
      %314 = vmatprep.mubr.bf16.mxu0 0
      %315 = vmatmul.mubr.bf16.gmra.mxu0 %v234
      %v316 = vpop.f32.mrf.mxu0
      %v317 = vadd.f32 0.0, %v316
      %v318 = vpop.f32.mrf.mxu0
      %v319 = vpop.f32.mrf.mxu0
      %v320 = vadd.f32 0.0, %v319
      %v321 = vpop.f32.mrf.mxu0
      %322 = vmatprep.mubr.bf16.mxu0 0
      %323 = vmatmul.mubr.bf16.gmra.mxu0 %v237
      %v324 = vpop.f32.mrf.mxu0
      %v325 = vadd.f32 0.0, %v324
      %v326 = vpop.f32.mrf.mxu0
      %v327 = vpop.f32.mrf.mxu0
      %v328 = vadd.f32 0.0, %v327
      %v329 = vpop.f32.mrf.mxu0
      %330 = vmatprep.mubr.bf16.mxu0 0
      %331 = vmatmul.mubr.bf16.gmra.mxu0 %v240
      %v332 = vpop.f32.mrf.mxu0
      %v333 = vadd.f32 0.0, %v332
      %v334 = vpop.f32.mrf.mxu0
      %v335 = vpop.f32.mrf.mxu0
      %v336 = vadd.f32 0.0, %v335
      %v337 = vpop.f32.mrf.mxu0
      %338 = vdwg.mxu0
      %v339 = vlaneseq
      %v340 = vand.u32 %v339, 127
      %vm341 = vcmp.lt.s32.totalorder %v340, 8
      %v342 = vsel %vm341, 0.0, -1e+30
      %v343 = vpack.c.bf16 %v280, %v277
      %v344 = vpack.c.bf16 %v288, %v285
      %v345 = vpack.c.bf16 %v296, %v293
      %v346 = vpack.c.bf16 %v304, %v301
      %v347 = vpack.c.bf16 %v312, %v309
      %v348 = vpack.c.bf16 %v320, %v317
      %v349 = vpack.c.bf16 %v328, %v325
      %v350 = vpack.c.bf16 %v336, %v333
      %359 = vrot.lane.b32.xlu0 %v343, 96
      %v360 = vpop.permute.xlu0 %359
      %361 = vrot.lane.b32.xlu0 %v344, 96
      %v362 = vpop.permute.xlu0 %361
      %363 = vrot.lane.b32.xlu0 %v345, 96
      %v364 = vpop.permute.xlu0 %363
      %365 = vrot.lane.b32.xlu0 %v346, 96
      %v366 = vpop.permute.xlu0 %365
      %367 = vrot.lane.b32.xlu0 %v347, 96
      %v368 = vpop.permute.xlu0 %367
      %369 = vrot.lane.b32.xlu0 %v348, 96
      %v370 = vpop.permute.xlu0 %369
      %371 = vrot.lane.b32.xlu0 %v349, 96
      %v372 = vpop.permute.xlu0 %371
      %373 = vrot.lane.b32.xlu0 %v350, 96
      %v374 = vpop.permute.xlu0 %373
      %vm375 = vcmask 64512
      %v377 = vsel %vm375, %v343, 0
      %v380 = vsel %vm375, %v344, 0
      %v383 = vsel %vm375, %v345, 0
      %v386 = vsel %vm375, %v346, 0
      %v389 = vsel %vm375, %v347, 0
      %v392 = vsel %vm375, %v348, 0
      %v395 = vsel %vm375, %v349, 0
      %v398 = vsel %vm375, %v350, 0
      %v401 = vsel %vm375, %v360, 0
      %v404 = vsel %vm375, %v362, 0
      %v407 = vsel %vm375, %v364, 0
      %v410 = vsel %vm375, %v366, 0
      %v413 = vsel %vm375, %v368, 0
      %v416 = vsel %vm375, %v370, 0
      %v419 = vsel %vm375, %v372, 0
      %v422 = vsel %vm375, %v374, 0
      %424 = vmatprep.subr.bf16.mxu0 0
      %425 = vmatpush1.bf16.xpose.msra.mxu0 %v422
      %426 = vmatprep.subr.bf16.mxu0 0
      %427 = vmatpush1.bf16.xpose.msra.mxu0 %v419
      %428 = vmatprep.subr.bf16.mxu0 0
      %429 = vmatpush1.bf16.xpose.msra.mxu0 %v416
      %430 = vmatprep.subr.bf16.mxu0 0
      %431 = vmatpush1.bf16.xpose.msra.mxu0 %v413
      %432 = vmatprep.subr.bf16.mxu0 0
      %433 = vmatpush1.bf16.xpose.msra.mxu0 %v410
      %434 = vmatprep.subr.bf16.mxu0 0
      %435 = vmatpush1.bf16.xpose.msra.mxu0 %v407
      %436 = vmatprep.subr.bf16.mxu0 0
      %437 = vmatpush1.bf16.xpose.msra.mxu0 %v404
      %438 = vmatprep.subr.bf16.mxu0 0
      %439 = vmatpush1.bf16.xpose.msra.mxu0 %v401
      %440 = vmatprep.subr.bf16.mxu0 0
      %441 = vmatpush2.bf16.xpose.msra.mxu0 0
      %442 = vmatprep.subr.bf16.mxu0 0
      %443 = vmatpush2.bf16.xpose.msra.mxu0 0
      %444 = vmatprep.subr.bf16.mxu0 0
      %445 = vmatpush2.bf16.xpose.msra.mxu0 0
      %446 = vmatprep.subr.bf16.mxu0 0
      %447 = vmatpush2.bf16.xpose.msra.mxu0 0
      %448 = vmatprep.subr.bf16.mxu0 0
      %449 = vmatpush2.bf16.xpose.msra.mxu0 0
      %450 = vmatprep.subr.bf16.mxu0 0
      %451 = vmatpush2.bf16.xpose.msra.mxu0 0
      %452 = vmatprep.subr.bf16.mxu0 0
      %453 = vmatpush2.bf16.xpose.msra.mxu0 0
      %454 = vmatprep.subr.bf16.mxu0 0
      %455 = vmatpush2.bf16.xpose.msra.mxu0 0
      %456 = vmatprep.mubr.bf16.mxu0 0
      %457 = vmatmul.mubr.bf16.gmra.mxu0 %v377
      %v458 = vpop.f32.mrf.mxu0
      %v459 = vadd.f32 %v342, %v458
      %v460 = vpop.f32.mrf.mxu0
      %v461 = vpop.f32.mrf.mxu0
      %v462 = vadd.f32 %v342, %v461
      %v463 = vpop.f32.mrf.mxu0
      %464 = vmatprep.mubr.bf16.mxu0 0
      %465 = vmatmul.mubr.bf16.gmra.mxu0 %v380
      %v466 = vpop.f32.mrf.mxu0
      %v467 = vadd.f32 %v342, %v466
      %v468 = vpop.f32.mrf.mxu0
      %v469 = vpop.f32.mrf.mxu0
      %v470 = vadd.f32 %v342, %v469
      %v471 = vpop.f32.mrf.mxu0
      %472 = vmatprep.mubr.bf16.mxu0 0
      %473 = vmatmul.mubr.bf16.gmra.mxu0 %v383
      %v474 = vpop.f32.mrf.mxu0
      %v475 = vadd.f32 %v342, %v474
      %v476 = vpop.f32.mrf.mxu0
      %v477 = vpop.f32.mrf.mxu0
      %v478 = vadd.f32 %v342, %v477
      %v479 = vpop.f32.mrf.mxu0
      %480 = vmatprep.mubr.bf16.mxu0 0
      %481 = vmatmul.mubr.bf16.gmra.mxu0 %v386
      %v482 = vpop.f32.mrf.mxu0
      %v483 = vadd.f32 %v342, %v482
      %v484 = vpop.f32.mrf.mxu0
      %v485 = vpop.f32.mrf.mxu0
      %v486 = vadd.f32 %v342, %v485
      %v487 = vpop.f32.mrf.mxu0
      %488 = vmatprep.mubr.bf16.mxu0 0
      %489 = vmatmul.mubr.bf16.gmra.mxu0 %v389
      %v490 = vpop.f32.mrf.mxu0
      %v491 = vadd.f32 %v342, %v490
      %v492 = vpop.f32.mrf.mxu0
      %v493 = vpop.f32.mrf.mxu0
      %v494 = vadd.f32 %v342, %v493
      %v495 = vpop.f32.mrf.mxu0
      %496 = vmatprep.mubr.bf16.mxu0 0
      %497 = vmatmul.mubr.bf16.gmra.mxu0 %v392
      %v498 = vpop.f32.mrf.mxu0
      %v499 = vadd.f32 %v342, %v498
      %v500 = vpop.f32.mrf.mxu0
      %v501 = vpop.f32.mrf.mxu0
      %v502 = vadd.f32 %v342, %v501
      %v503 = vpop.f32.mrf.mxu0
      %504 = vmatprep.mubr.bf16.mxu0 0
      %505 = vmatmul.mubr.bf16.gmra.mxu0 %v395
      %v506 = vpop.f32.mrf.mxu0
      %v507 = vadd.f32 %v342, %v506
      %v508 = vpop.f32.mrf.mxu0
      %v509 = vpop.f32.mrf.mxu0
      %v510 = vadd.f32 %v342, %v509
      %v511 = vpop.f32.mrf.mxu0
      %512 = vmatprep.mubr.bf16.mxu0 0
      %513 = vmatmul.mubr.bf16.gmra.mxu0 %v398
      %v514 = vpop.f32.mrf.mxu0
      %v515 = vadd.f32 %v342, %v514
      %v516 = vpop.f32.mrf.mxu0
      %v517 = vpop.f32.mrf.mxu0
      %v518 = vadd.f32 %v342, %v517
      %v519 = vpop.f32.mrf.mxu0
      %520 = vdwg.mxu0
      %521 = vmax.xlane.f32.xlu0 %v459
      %v522 = vpop.xlane.xlu0 %521
      %523 = vmax.xlane.f32.xlu0 %v462
      %v524 = vpop.xlane.xlu0 %523
      %525 = vmax.xlane.f32.xlu0 %v467
      %v526 = vpop.xlane.xlu0 %525
      %527 = vmax.xlane.f32.xlu0 %v470
      %v528 = vpop.xlane.xlu0 %527
      %529 = vmax.xlane.f32.xlu0 %v475
      %v530 = vpop.xlane.xlu0 %529
      %531 = vmax.xlane.f32.xlu0 %v478
      %v532 = vpop.xlane.xlu0 %531
      %533 = vmax.xlane.f32.xlu0 %v483
      %v534 = vpop.xlane.xlu0 %533
      %535 = vmax.xlane.f32.xlu0 %v486
      %v536 = vpop.xlane.xlu0 %535
      %537 = vmax.xlane.f32.xlu0 %v491
      %v538 = vpop.xlane.xlu0 %537
      %539 = vmax.xlane.f32.xlu0 %v494
      %v540 = vpop.xlane.xlu0 %539
      %541 = vmax.xlane.f32.xlu0 %v499
      %v542 = vpop.xlane.xlu0 %541
      %543 = vmax.xlane.f32.xlu0 %v502
      %v544 = vpop.xlane.xlu0 %543
      %545 = vmax.xlane.f32.xlu0 %v507
      %v546 = vpop.xlane.xlu0 %545
      %547 = vmax.xlane.f32.xlu0 %v510
      %v548 = vpop.xlane.xlu0 %547
      %549 = vmax.xlane.f32.xlu0 %v515
      %v550 = vpop.xlane.xlu0 %549
      %551 = vmax.xlane.f32.xlu0 %v518
      %v552 = vpop.xlane.xlu0 %551
      %v553 = vsub.f32 %v459, %v522
      %v554 = vsub.f32 %v462, %v524
      %v555 = vsub.f32 %v467, %v526
      %v556 = vsub.f32 %v470, %v528
      %v557 = vsub.f32 %v475, %v530
      %v558 = vsub.f32 %v478, %v532
      %v559 = vsub.f32 %v483, %v534
      %v560 = vsub.f32 %v486, %v536
      %v561 = vsub.f32 %v491, %v538
      %v562 = vsub.f32 %v494, %v540
      %v563 = vsub.f32 %v499, %v542
      %v564 = vsub.f32 %v502, %v544
      %v565 = vsub.f32 %v507, %v546
      %v566 = vsub.f32 %v510, %v548
      %v567 = vsub.f32 %v515, %v550
      %v568 = vsub.f32 %v518, %v552
      %v569 = vmul.f32 %v553, 1.442695
      %v570 = vpow.pop %v569
      %v571 = vmul.f32 %v554, 1.442695
      %v572 = vpow.pop %v571
      %v573 = vmul.f32 %v555, 1.442695
      %v574 = vpow.pop %v573
      %v575 = vmul.f32 %v556, 1.442695
      %v576 = vpow.pop %v575
      %v577 = vmul.f32 %v557, 1.442695
      %v578 = vpow.pop %v577
      %v579 = vmul.f32 %v558, 1.442695
      %v580 = vpow.pop %v579
      %v581 = vmul.f32 %v559, 1.442695
      %v582 = vpow.pop %v581
      %v583 = vmul.f32 %v560, 1.442695
      %v584 = vpow.pop %v583
      %v585 = vmul.f32 %v561, 1.442695
      %v586 = vpow.pop %v585
      %v587 = vmul.f32 %v562, 1.442695
      %v588 = vpow.pop %v587
      %v589 = vmul.f32 %v563, 1.442695
      %v590 = vpow.pop %v589
      %v591 = vmul.f32 %v564, 1.442695
      %v592 = vpow.pop %v591
      %v593 = vmul.f32 %v565, 1.442695
      %v594 = vpow.pop %v593
      %v595 = vmul.f32 %v566, 1.442695
      %v596 = vpow.pop %v595
      %v597 = vmul.f32 %v567, 1.442695
      %v598 = vpow.pop %v597
      %v599 = vmul.f32 %v568, 1.442695
      %v600 = vpow.pop %v599
      %601 = vadd.xlane.f32.xlu0 %v570
      %v602 = vpop.xlane.xlu0 %601
      %603 = vadd.xlane.f32.xlu0 %v572
      %v604 = vpop.xlane.xlu0 %603
      %605 = vadd.xlane.f32.xlu0 %v574
      %v606 = vpop.xlane.xlu0 %605
      %607 = vadd.xlane.f32.xlu0 %v576
      %v608 = vpop.xlane.xlu0 %607
      %609 = vadd.xlane.f32.xlu0 %v578
      %v610 = vpop.xlane.xlu0 %609
      %611 = vadd.xlane.f32.xlu0 %v580
      %v612 = vpop.xlane.xlu0 %611
      %613 = vadd.xlane.f32.xlu0 %v582
      %v614 = vpop.xlane.xlu0 %613
      %615 = vadd.xlane.f32.xlu0 %v584
      %v616 = vpop.xlane.xlu0 %615
      %617 = vadd.xlane.f32.xlu0 %v586
      %v618 = vpop.xlane.xlu0 %617
      %619 = vadd.xlane.f32.xlu0 %v588
      %v620 = vpop.xlane.xlu0 %619
      %621 = vadd.xlane.f32.xlu0 %v590
      %v622 = vpop.xlane.xlu0 %621
      %623 = vadd.xlane.f32.xlu0 %v592
      %v624 = vpop.xlane.xlu0 %623
      %625 = vadd.xlane.f32.xlu0 %v594
      %v626 = vpop.xlane.xlu0 %625
      %627 = vadd.xlane.f32.xlu0 %v596
      %v628 = vpop.xlane.xlu0 %627
      %629 = vadd.xlane.f32.xlu0 %v598
      %v630 = vpop.xlane.xlu0 %629
      %631 = vadd.xlane.f32.xlu0 %v600
      %v632 = vpop.xlane.xlu0 %631
      %v633 = vrcp.pop %v602
      %v634 = vrcp.pop %v604
      %v635 = vrcp.pop %v606
      %v636 = vrcp.pop %v608
      %v637 = vrcp.pop %v610
      %v638 = vrcp.pop %v612
      %v639 = vrcp.pop %v614
      %v640 = vrcp.pop %v616
      %v641 = vrcp.pop %v618
      %v642 = vrcp.pop %v620
      %v643 = vrcp.pop %v622
      %v644 = vrcp.pop %v624
      %v645 = vrcp.pop %v626
      %v646 = vrcp.pop %v628
      %v647 = vrcp.pop %v630
      %v648 = vrcp.pop %v632
      %v649 = vmul.f32 %v570, %v633
      %v650 = vmul.f32 %v572, %v634
      %v651 = vmul.f32 %v574, %v635
      %v652 = vmul.f32 %v576, %v636
      %v653 = vmul.f32 %v578, %v637
      %v654 = vmul.f32 %v580, %v638
      %v655 = vmul.f32 %v582, %v639
      %v656 = vmul.f32 %v584, %v640
      %v657 = vmul.f32 %v586, %v641
      %v658 = vmul.f32 %v588, %v642
      %v659 = vmul.f32 %v590, %v643
      %v660 = vmul.f32 %v592, %v644
      %v661 = vmul.f32 %v594, %v645
      %v662 = vmul.f32 %v596, %v646
      %v663 = vmul.f32 %v598, %v647
      %v664 = vmul.f32 %v600, %v648
      %v665 = vpack.c.bf16 %v650, %v649
      %v666 = vpack.c.bf16 %v652, %v651
      %v667 = vpack.c.bf16 %v654, %v653
      %v668 = vpack.c.bf16 %v656, %v655
      %v669 = vpack.c.bf16 %v658, %v657
      %v670 = vpack.c.bf16 %v660, %v659
      %v671 = vpack.c.bf16 %v662, %v661
      %v672 = vpack.c.bf16 %v664, %v663
      %673 = vrot.lane.b32.xlu0 %v343, 64
      %v674 = vpop.permute.xlu0 %673
      %675 = vrot.lane.b32.xlu0 %v344, 64
      %v676 = vpop.permute.xlu0 %675
      %677 = vrot.lane.b32.xlu0 %v345, 64
      %v678 = vpop.permute.xlu0 %677
      %679 = vrot.lane.b32.xlu0 %v346, 64
      %v680 = vpop.permute.xlu0 %679
      %681 = vrot.lane.b32.xlu0 %v347, 64
      %v682 = vpop.permute.xlu0 %681
      %683 = vrot.lane.b32.xlu0 %v348, 64
      %v684 = vpop.permute.xlu0 %683
      %685 = vrot.lane.b32.xlu0 %v349, 64
      %v686 = vpop.permute.xlu0 %685
      %687 = vrot.lane.b32.xlu0 %v350, 64
      %v688 = vpop.permute.xlu0 %687
      %697 = vmatprep.subr.bf16.mxu0 0
      %698 = vmatpush1.bf16.msra.mxu0 %v688
      %699 = vmatprep.subr.bf16.mxu0 0
      %700 = vmatpush1.bf16.msra.mxu0 %v686
      %701 = vmatprep.subr.bf16.mxu0 0
      %702 = vmatpush1.bf16.msra.mxu0 %v684
      %703 = vmatprep.subr.bf16.mxu0 0
      %704 = vmatpush1.bf16.msra.mxu0 %v682
      %705 = vmatprep.subr.bf16.mxu0 0
      %706 = vmatpush1.bf16.msra.mxu0 %v680
      %707 = vmatprep.subr.bf16.mxu0 0
      %708 = vmatpush1.bf16.msra.mxu0 %v678
      %709 = vmatprep.subr.bf16.mxu0 0
      %710 = vmatpush1.bf16.msra.mxu0 %v676
      %711 = vmatprep.subr.bf16.mxu0 0
      %712 = vmatpush1.bf16.msra.mxu0 %v674
      %713 = vmatprep.subr.bf16.mxu0 0
      %714 = vmatpush2.bf16.msra.mxu0 0
      %715 = vmatprep.subr.bf16.mxu0 0
      %716 = vmatpush2.bf16.msra.mxu0 0
      %717 = vmatprep.subr.bf16.mxu0 0
      %718 = vmatpush2.bf16.msra.mxu0 0
      %719 = vmatprep.subr.bf16.mxu0 0
      %720 = vmatpush2.bf16.msra.mxu0 0
      %721 = vmatprep.subr.bf16.mxu0 0
      %722 = vmatpush2.bf16.msra.mxu0 0
      %723 = vmatprep.subr.bf16.mxu0 0
      %724 = vmatpush2.bf16.msra.mxu0 0
      %725 = vmatprep.subr.bf16.mxu0 0
      %726 = vmatpush2.bf16.msra.mxu0 0
      %727 = vmatprep.subr.bf16.mxu0 0
      %728 = vmatpush2.bf16.msra.mxu0 0
      %729 = vmatprep.mubr.bf16.mxu0 0
      %730 = vmatmul.mubr.bf16.gmra.mxu0 %v665
      %v731 = vpop.f32.mrf.mxu0
      %v732 = vadd.f32 0.0, %v731
      %v733 = vpop.f32.mrf.mxu0
      %v734 = vpop.f32.mrf.mxu0
      %v735 = vadd.f32 0.0, %v734
      %v736 = vpop.f32.mrf.mxu0
      %737 = vmatprep.mubr.bf16.mxu0 0
      %738 = vmatmul.mubr.bf16.gmra.mxu0 %v666
      %v739 = vpop.f32.mrf.mxu0
      %v740 = vadd.f32 0.0, %v739
      %v741 = vpop.f32.mrf.mxu0
      %v742 = vpop.f32.mrf.mxu0
      %v743 = vadd.f32 0.0, %v742
      %v744 = vpop.f32.mrf.mxu0
      %745 = vmatprep.mubr.bf16.mxu0 0
      %746 = vmatmul.mubr.bf16.gmra.mxu0 %v667
      %v747 = vpop.f32.mrf.mxu0
      %v748 = vadd.f32 0.0, %v747
      %v749 = vpop.f32.mrf.mxu0
      %v750 = vpop.f32.mrf.mxu0
      %v751 = vadd.f32 0.0, %v750
      %v752 = vpop.f32.mrf.mxu0
      %753 = vmatprep.mubr.bf16.mxu0 0
      %754 = vmatmul.mubr.bf16.gmra.mxu0 %v668
      %v755 = vpop.f32.mrf.mxu0
      %v756 = vadd.f32 0.0, %v755
      %v757 = vpop.f32.mrf.mxu0
      %v758 = vpop.f32.mrf.mxu0
      %v759 = vadd.f32 0.0, %v758
      %v760 = vpop.f32.mrf.mxu0
      %761 = vmatprep.mubr.bf16.mxu0 0
      %762 = vmatmul.mubr.bf16.gmra.mxu0 %v669
      %v763 = vpop.f32.mrf.mxu0
      %v764 = vadd.f32 0.0, %v763
      %v765 = vpop.f32.mrf.mxu0
      %v766 = vpop.f32.mrf.mxu0
      %v767 = vadd.f32 0.0, %v766
      %v768 = vpop.f32.mrf.mxu0
      %769 = vmatprep.mubr.bf16.mxu0 0
      %770 = vmatmul.mubr.bf16.gmra.mxu0 %v670
      %v771 = vpop.f32.mrf.mxu0
      %v772 = vadd.f32 0.0, %v771
      %v773 = vpop.f32.mrf.mxu0
      %v774 = vpop.f32.mrf.mxu0
      %v775 = vadd.f32 0.0, %v774
      %v776 = vpop.f32.mrf.mxu0
      %777 = vmatprep.mubr.bf16.mxu0 0
      %778 = vmatmul.mubr.bf16.gmra.mxu0 %v671
      %v779 = vpop.f32.mrf.mxu0
      %v780 = vadd.f32 0.0, %v779
      %v781 = vpop.f32.mrf.mxu0
      %v782 = vpop.f32.mrf.mxu0
      %v783 = vadd.f32 0.0, %v782
      %v784 = vpop.f32.mrf.mxu0
      %785 = vmatprep.mubr.bf16.mxu0 0
      %786 = vmatmul.mubr.bf16.gmra.mxu0 %v672
      %v787 = vpop.f32.mrf.mxu0
      %v788 = vadd.f32 0.0, %v787
      %v789 = vpop.f32.mrf.mxu0
      %v790 = vpop.f32.mrf.mxu0
      %v791 = vadd.f32 0.0, %v790
      %v792 = vpop.f32.mrf.mxu0
      %793 = vdwg.mxu0
      %794 = vst.msk [vmem:[#allocation2] sm:$0xff] %vm375, %v732
      %795 = vst.msk [vmem:[#allocation2 + $0x8] sm:$0xff] %vm375, %v735
      %796 = vst.msk [vmem:[#allocation2 + $0x10] sm:$0xff] %vm375, %v740
      %797 = vst.msk [vmem:[#allocation2 + $0x18] sm:$0xff] %vm375, %v743
      %798 = vst.msk [vmem:[#allocation2 + $0x20] sm:$0xff] %vm375, %v748
      %799 = vst.msk [vmem:[#allocation2 + $0x28] sm:$0xff] %vm375, %v751
      %800 = vst.msk [vmem:[#allocation2 + $0x30] sm:$0xff] %vm375, %v756
      %801 = vst.msk [vmem:[#allocation2 + $0x38] sm:$0xff] %vm375, %v759
      %802 = vst.msk [vmem:[#allocation2 + $0x40] sm:$0xff] %vm375, %v764
      %803 = vst.msk [vmem:[#allocation2 + $0x48] sm:$0xff] %vm375, %v767
      %804 = vst.msk [vmem:[#allocation2 + $0x50] sm:$0xff] %vm375, %v772
      %805 = vst.msk [vmem:[#allocation2 + $0x58] sm:$0xff] %vm375, %v775
      %806 = vst.msk [vmem:[#allocation2 + $0x60] sm:$0xff] %vm375, %v780
      %807 = vst.msk [vmem:[#allocation2 + $0x68] sm:$0xff] %vm375, %v783
      %808 = vst.msk [vmem:[#allocation2 + $0x70] sm:$0xff] %vm375, %v788
      %809 = vst.msk [vmem:[#allocation2 + $0x78] sm:$0xff] %vm375, %v791
      %810 = vrot.lane.b32.xlu0 %v343, 120
      %v811 = vpop.permute.xlu0 %810
      %812 = vrot.lane.b32.xlu0 %v344, 120
      %v813 = vpop.permute.xlu0 %812
      %814 = vrot.lane.b32.xlu0 %v345, 120
      %v815 = vpop.permute.xlu0 %814
      %816 = vrot.lane.b32.xlu0 %v346, 120
      %v817 = vpop.permute.xlu0 %816
      %818 = vrot.lane.b32.xlu0 %v347, 120
      %v819 = vpop.permute.xlu0 %818
      %820 = vrot.lane.b32.xlu0 %v348, 120
      %v821 = vpop.permute.xlu0 %820
      %822 = vrot.lane.b32.xlu0 %v349, 120
      %v823 = vpop.permute.xlu0 %822
      %824 = vrot.lane.b32.xlu0 %v350, 120
      %v825 = vpop.permute.xlu0 %824
      %826 = vrot.lane.b32.xlu0 %v343, 88
      %v827 = vpop.permute.xlu0 %826
      %828 = vrot.lane.b32.xlu0 %v344, 88
      %v829 = vpop.permute.xlu0 %828
      %830 = vrot.lane.b32.xlu0 %v345, 88
      %v831 = vpop.permute.xlu0 %830
      %832 = vrot.lane.b32.xlu0 %v346, 88
      %v833 = vpop.permute.xlu0 %832
      %834 = vrot.lane.b32.xlu0 %v347, 88
      %v835 = vpop.permute.xlu0 %834
      %836 = vrot.lane.b32.xlu0 %v348, 88
      %v837 = vpop.permute.xlu0 %836
      %838 = vrot.lane.b32.xlu0 %v349, 88
      %v839 = vpop.permute.xlu0 %838
      %840 = vrot.lane.b32.xlu0 %v350, 88
      %v841 = vpop.permute.xlu0 %840
      %v843 = vsel %vm375, %v811, 0
      %v846 = vsel %vm375, %v813, 0
      %v849 = vsel %vm375, %v815, 0
      %v852 = vsel %vm375, %v817, 0
      %v855 = vsel %vm375, %v819, 0
      %v858 = vsel %vm375, %v821, 0
      %v861 = vsel %vm375, %v823, 0
      %v864 = vsel %vm375, %v825, 0
      %v867 = vsel %vm375, %v827, 0
      %v870 = vsel %vm375, %v829, 0
      %v873 = vsel %vm375, %v831, 0
      %v876 = vsel %vm375, %v833, 0
      %v879 = vsel %vm375, %v835, 0
      %v882 = vsel %vm375, %v837, 0
      %v885 = vsel %vm375, %v839, 0
      %v888 = vsel %vm375, %v841, 0
      %890 = vmatprep.subr.bf16.mxu0 0
      %891 = vmatpush1.bf16.xpose.msra.mxu0 %v888
      %892 = vmatprep.subr.bf16.mxu0 0
      %893 = vmatpush1.bf16.xpose.msra.mxu0 %v885
      %894 = vmatprep.subr.bf16.mxu0 0
      %895 = vmatpush1.bf16.xpose.msra.mxu0 %v882
      %896 = vmatprep.subr.bf16.mxu0 0
      %897 = vmatpush1.bf16.xpose.msra.mxu0 %v879
      %898 = vmatprep.subr.bf16.mxu0 0
      %899 = vmatpush1.bf16.xpose.msra.mxu0 %v876
      %900 = vmatprep.subr.bf16.mxu0 0
      %901 = vmatpush1.bf16.xpose.msra.mxu0 %v873
      %902 = vmatprep.subr.bf16.mxu0 0
      %903 = vmatpush1.bf16.xpose.msra.mxu0 %v870
      %904 = vmatprep.subr.bf16.mxu0 0
      %905 = vmatpush1.bf16.xpose.msra.mxu0 %v867
      %906 = vmatprep.subr.bf16.mxu0 0
      %907 = vmatpush2.bf16.xpose.msra.mxu0 0
      %908 = vmatprep.subr.bf16.mxu0 0
      %909 = vmatpush2.bf16.xpose.msra.mxu0 0
      %910 = vmatprep.subr.bf16.mxu0 0
      %911 = vmatpush2.bf16.xpose.msra.mxu0 0
      %912 = vmatprep.subr.bf16.mxu0 0
      %913 = vmatpush2.bf16.xpose.msra.mxu0 0
      %914 = vmatprep.subr.bf16.mxu0 0
      %915 = vmatpush2.bf16.xpose.msra.mxu0 0
      %916 = vmatprep.subr.bf16.mxu0 0
      %917 = vmatpush2.bf16.xpose.msra.mxu0 0
      %918 = vmatprep.subr.bf16.mxu0 0
      %919 = vmatpush2.bf16.xpose.msra.mxu0 0
      %920 = vmatprep.subr.bf16.mxu0 0
      %921 = vmatpush2.bf16.xpose.msra.mxu0 0
      %922 = vmatprep.mubr.bf16.mxu0 0
      %923 = vmatmul.mubr.bf16.gmra.mxu0 %v843
      %v924 = vpop.f32.mrf.mxu0
      %v925 = vadd.f32 %v342, %v924
      %v926 = vpop.f32.mrf.mxu0
      %v927 = vpop.f32.mrf.mxu0
      %v928 = vadd.f32 %v342, %v927
      %v929 = vpop.f32.mrf.mxu0
      %930 = vmatprep.mubr.bf16.mxu0 0
      %931 = vmatmul.mubr.bf16.gmra.mxu0 %v846
      %v932 = vpop.f32.mrf.mxu0
      %v933 = vadd.f32 %v342, %v932
      %v934 = vpop.f32.mrf.mxu0
      %v935 = vpop.f32.mrf.mxu0
      %v936 = vadd.f32 %v342, %v935
      %v937 = vpop.f32.mrf.mxu0
      %938 = vmatprep.mubr.bf16.mxu0 0
      %939 = vmatmul.mubr.bf16.gmra.mxu0 %v849
      %v940 = vpop.f32.mrf.mxu0
      %v941 = vadd.f32 %v342, %v940
      %v942 = vpop.f32.mrf.mxu0
      %v943 = vpop.f32.mrf.mxu0
      %v944 = vadd.f32 %v342, %v943
      %v945 = vpop.f32.mrf.mxu0
      %946 = vmatprep.mubr.bf16.mxu0 0
      %947 = vmatmul.mubr.bf16.gmra.mxu0 %v852
      %v948 = vpop.f32.mrf.mxu0
      %v949 = vadd.f32 %v342, %v948
      %v950 = vpop.f32.mrf.mxu0
      %v951 = vpop.f32.mrf.mxu0
      %v952 = vadd.f32 %v342, %v951
      %v953 = vpop.f32.mrf.mxu0
      %954 = vmatprep.mubr.bf16.mxu0 0
      %955 = vmatmul.mubr.bf16.gmra.mxu0 %v855
      %v956 = vpop.f32.mrf.mxu0
      %v957 = vadd.f32 %v342, %v956
      %v958 = vpop.f32.mrf.mxu0
      %v959 = vpop.f32.mrf.mxu0
      %v960 = vadd.f32 %v342, %v959
      %v961 = vpop.f32.mrf.mxu0
      %962 = vmatprep.mubr.bf16.mxu0 0
      %963 = vmatmul.mubr.bf16.gmra.mxu0 %v858
      %v964 = vpop.f32.mrf.mxu0
      %v965 = vadd.f32 %v342, %v964
      %v966 = vpop.f32.mrf.mxu0
      %v967 = vpop.f32.mrf.mxu0
      %v968 = vadd.f32 %v342, %v967
      %v969 = vpop.f32.mrf.mxu0
      %970 = vmatprep.mubr.bf16.mxu0 0
      %971 = vmatmul.mubr.bf16.gmra.mxu0 %v861
      %v972 = vpop.f32.mrf.mxu0
      %v973 = vadd.f32 %v342, %v972
      %v974 = vpop.f32.mrf.mxu0
      %v975 = vpop.f32.mrf.mxu0
      %v976 = vadd.f32 %v342, %v975
      %v977 = vpop.f32.mrf.mxu0
      %978 = vmatprep.mubr.bf16.mxu0 0
      %979 = vmatmul.mubr.bf16.gmra.mxu0 %v864
      %v980 = vpop.f32.mrf.mxu0
      %v981 = vadd.f32 %v342, %v980
      %v982 = vpop.f32.mrf.mxu0
      %v983 = vpop.f32.mrf.mxu0
      %v984 = vadd.f32 %v342, %v983
      %v985 = vpop.f32.mrf.mxu0
      %986 = vdwg.mxu0
      %987 = vmax.xlane.f32.xlu0 %v925
      %v988 = vpop.xlane.xlu0 %987
      %989 = vmax.xlane.f32.xlu0 %v928
      %v990 = vpop.xlane.xlu0 %989
      %991 = vmax.xlane.f32.xlu0 %v933
      %v992 = vpop.xlane.xlu0 %991
      %993 = vmax.xlane.f32.xlu0 %v936
      %v994 = vpop.xlane.xlu0 %993
      %995 = vmax.xlane.f32.xlu0 %v941
      %v996 = vpop.xlane.xlu0 %995
      %997 = vmax.xlane.f32.xlu0 %v944
      %v998 = vpop.xlane.xlu0 %997
      %999 = vmax.xlane.f32.xlu0 %v949
      %v1000 = vpop.xlane.xlu0 %999
      %1001 = vmax.xlane.f32.xlu0 %v952
      %v1002 = vpop.xlane.xlu0 %1001
      %1003 = vmax.xlane.f32.xlu0 %v957
      %v1004 = vpop.xlane.xlu0 %1003
      %1005 = vmax.xlane.f32.xlu0 %v960
      %v1006 = vpop.xlane.xlu0 %1005
      %1007 = vmax.xlane.f32.xlu0 %v965
      %v1008 = vpop.xlane.xlu0 %1007
      %1009 = vmax.xlane.f32.xlu0 %v968
      %v1010 = vpop.xlane.xlu0 %1009
      %1011 = vmax.xlane.f32.xlu0 %v973
      %v1012 = vpop.xlane.xlu0 %1011
      %1013 = vmax.xlane.f32.xlu0 %v976
      %v1014 = vpop.xlane.xlu0 %1013
      %1015 = vmax.xlane.f32.xlu0 %v981
      %v1016 = vpop.xlane.xlu0 %1015
      %1017 = vmax.xlane.f32.xlu0 %v984
      %v1018 = vpop.xlane.xlu0 %1017
      %v1019 = vsub.f32 %v925, %v988
      %v1020 = vsub.f32 %v928, %v990
      %v1021 = vsub.f32 %v933, %v992
      %v1022 = vsub.f32 %v936, %v994
      %v1023 = vsub.f32 %v941, %v996
      %v1024 = vsub.f32 %v944, %v998
      %v1025 = vsub.f32 %v949, %v1000
      %v1026 = vsub.f32 %v952, %v1002
      %v1027 = vsub.f32 %v957, %v1004
      %v1028 = vsub.f32 %v960, %v1006
      %v1029 = vsub.f32 %v965, %v1008
      %v1030 = vsub.f32 %v968, %v1010
      %v1031 = vsub.f32 %v973, %v1012
      %v1032 = vsub.f32 %v976, %v1014
      %v1033 = vsub.f32 %v981, %v1016
      %v1034 = vsub.f32 %v984, %v1018
      %v1035 = vmul.f32 %v1019, 1.442695
      %v1036 = vpow.pop %v1035
      %v1037 = vmul.f32 %v1020, 1.442695
      %v1038 = vpow.pop %v1037
      %v1039 = vmul.f32 %v1021, 1.442695
      %v1040 = vpow.pop %v1039
      %v1041 = vmul.f32 %v1022, 1.442695
      %v1042 = vpow.pop %v1041
      %v1043 = vmul.f32 %v1023, 1.442695
      %v1044 = vpow.pop %v1043
      %v1045 = vmul.f32 %v1024, 1.442695
      %v1046 = vpow.pop %v1045
      %v1047 = vmul.f32 %v1025, 1.442695
      %v1048 = vpow.pop %v1047
      %v1049 = vmul.f32 %v1026, 1.442695
      %v1050 = vpow.pop %v1049
      %v1051 = vmul.f32 %v1027, 1.442695
      %v1052 = vpow.pop %v1051
      %v1053 = vmul.f32 %v1028, 1.442695
      %v1054 = vpow.pop %v1053
      %v1055 = vmul.f32 %v1029, 1.442695
      %v1056 = vpow.pop %v1055
      %v1057 = vmul.f32 %v1030, 1.442695
      %v1058 = vpow.pop %v1057
      %v1059 = vmul.f32 %v1031, 1.442695
      %v1060 = vpow.pop %v1059
      %v1061 = vmul.f32 %v1032, 1.442695
      %v1062 = vpow.pop %v1061
      %v1063 = vmul.f32 %v1033, 1.442695
      %v1064 = vpow.pop %v1063
      %v1065 = vmul.f32 %v1034, 1.442695
      %v1066 = vpow.pop %v1065
      %1067 = vadd.xlane.f32.xlu0 %v1036
      %v1068 = vpop.xlane.xlu0 %1067
      %1069 = vadd.xlane.f32.xlu0 %v1038
      %v1070 = vpop.xlane.xlu0 %1069
      %1071 = vadd.xlane.f32.xlu0 %v1040
      %v1072 = vpop.xlane.xlu0 %1071
      %1073 = vadd.xlane.f32.xlu0 %v1042
      %v1074 = vpop.xlane.xlu0 %1073
      %1075 = vadd.xlane.f32.xlu0 %v1044
      %v1076 = vpop.xlane.xlu0 %1075
      %1077 = vadd.xlane.f32.xlu0 %v1046
      %v1078 = vpop.xlane.xlu0 %1077
      %1079 = vadd.xlane.f32.xlu0 %v1048
      %v1080 = vpop.xlane.xlu0 %1079
      %1081 = vadd.xlane.f32.xlu0 %v1050
      %v1082 = vpop.xlane.xlu0 %1081
      %1083 = vadd.xlane.f32.xlu0 %v1052
      %v1084 = vpop.xlane.xlu0 %1083
      %1085 = vadd.xlane.f32.xlu0 %v1054
      %v1086 = vpop.xlane.xlu0 %1085
      %1087 = vadd.xlane.f32.xlu0 %v1056
      %v1088 = vpop.xlane.xlu0 %1087
      %1089 = vadd.xlane.f32.xlu0 %v1058
      %v1090 = vpop.xlane.xlu0 %1089
      %1091 = vadd.xlane.f32.xlu0 %v1060
      %v1092 = vpop.xlane.xlu0 %1091
      %1093 = vadd.xlane.f32.xlu0 %v1062
      %v1094 = vpop.xlane.xlu0 %1093
      %1095 = vadd.xlane.f32.xlu0 %v1064
      %v1096 = vpop.xlane.xlu0 %1095
      %1097 = vadd.xlane.f32.xlu0 %v1066
      %v1098 = vpop.xlane.xlu0 %1097
      %v1099 = vrcp.pop %v1068
      %v1100 = vrcp.pop %v1070
      %v1101 = vrcp.pop %v1072
      %v1102 = vrcp.pop %v1074
      %v1103 = vrcp.pop %v1076
      %v1104 = vrcp.pop %v1078
      %v1105 = vrcp.pop %v1080
      %v1106 = vrcp.pop %v1082
      %v1107 = vrcp.pop %v1084
      %v1108 = vrcp.pop %v1086
      %v1109 = vrcp.pop %v1088
      %v1110 = vrcp.pop %v1090
      %v1111 = vrcp.pop %v1092
      %v1112 = vrcp.pop %v1094
      %v1113 = vrcp.pop %v1096
      %v1114 = vrcp.pop %v1098
      %v1115 = vmul.f32 %v1036, %v1099
      %v1116 = vmul.f32 %v1038, %v1100
      %v1117 = vmul.f32 %v1040, %v1101
      %v1118 = vmul.f32 %v1042, %v1102
      %v1119 = vmul.f32 %v1044, %v1103
      %v1120 = vmul.f32 %v1046, %v1104
      %v1121 = vmul.f32 %v1048, %v1105
      %v1122 = vmul.f32 %v1050, %v1106
      %v1123 = vmul.f32 %v1052, %v1107
      %v1124 = vmul.f32 %v1054, %v1108
      %v1125 = vmul.f32 %v1056, %v1109
      %v1126 = vmul.f32 %v1058, %v1110
      %v1127 = vmul.f32 %v1060, %v1111
      %v1128 = vmul.f32 %v1062, %v1112
      %v1129 = vmul.f32 %v1064, %v1113
      %v1130 = vmul.f32 %v1066, %v1114
      %v1131 = vpack.c.bf16 %v1116, %v1115
      %v1132 = vpack.c.bf16 %v1118, %v1117
      %v1133 = vpack.c.bf16 %v1120, %v1119
      %v1134 = vpack.c.bf16 %v1122, %v1121
      %v1135 = vpack.c.bf16 %v1124, %v1123
      %v1136 = vpack.c.bf16 %v1126, %v1125
      %v1137 = vpack.c.bf16 %v1128, %v1127
      %v1138 = vpack.c.bf16 %v1130, %v1129
      %1139 = vrot.lane.b32.xlu0 %v343, 56
      %v1140 = vpop.permute.xlu0 %1139
      %1141 = vrot.lane.b32.xlu0 %v344, 56
      %v1142 = vpop.permute.xlu0 %1141
      %1143 = vrot.lane.b32.xlu0 %v345, 56
      %v1144 = vpop.permute.xlu0 %1143
      %1145 = vrot.lane.b32.xlu0 %v346, 56
      %v1146 = vpop.permute.xlu0 %1145
      %1147 = vrot.lane.b32.xlu0 %v347, 56
      %v1148 = vpop.permute.xlu0 %1147
      %1149 = vrot.lane.b32.xlu0 %v348, 56
      %v1150 = vpop.permute.xlu0 %1149
      %1151 = vrot.lane.b32.xlu0 %v349, 56
      %v1152 = vpop.permute.xlu0 %1151
      %1153 = vrot.lane.b32.xlu0 %v350, 56
      %v1154 = vpop.permute.xlu0 %1153
      %1163 = vmatprep.subr.bf16.mxu0 0
      %1164 = vmatpush1.bf16.msra.mxu0 %v1154
      %1165 = vmatprep.subr.bf16.mxu0 0
      %1166 = vmatpush1.bf16.msra.mxu0 %v1152
      %1167 = vmatprep.subr.bf16.mxu0 0
      %1168 = vmatpush1.bf16.msra.mxu0 %v1150
      %1169 = vmatprep.subr.bf16.mxu0 0
      %1170 = vmatpush1.bf16.msra.mxu0 %v1148
      %1171 = vmatprep.subr.bf16.mxu0 0
      %1172 = vmatpush1.bf16.msra.mxu0 %v1146
      %1173 = vmatprep.subr.bf16.mxu0 0
      %1174 = vmatpush1.bf16.msra.mxu0 %v1144
      %1175 = vmatprep.subr.bf16.mxu0 0
      %1176 = vmatpush1.bf16.msra.mxu0 %v1142
      %1177 = vmatprep.subr.bf16.mxu0 0
      %1178 = vmatpush1.bf16.msra.mxu0 %v1140
      %1179 = vmatprep.subr.bf16.mxu0 0
      %1180 = vmatpush2.bf16.msra.mxu0 0
      %1181 = vmatprep.subr.bf16.mxu0 0
      %1182 = vmatpush2.bf16.msra.mxu0 0
      %1183 = vmatprep.subr.bf16.mxu0 0
      %1184 = vmatpush2.bf16.msra.mxu0 0
      %1185 = vmatprep.subr.bf16.mxu0 0
      %1186 = vmatpush2.bf16.msra.mxu0 0
      %1187 = vmatprep.subr.bf16.mxu0 0
      %1188 = vmatpush2.bf16.msra.mxu0 0
      %1189 = vmatprep.subr.bf16.mxu0 0
      %1190 = vmatpush2.bf16.msra.mxu0 0
      %1191 = vmatprep.subr.bf16.mxu0 0
      %1192 = vmatpush2.bf16.msra.mxu0 0
      %1193 = vmatprep.subr.bf16.mxu0 0
      %1194 = vmatpush2.bf16.msra.mxu0 0
      %1195 = vmatprep.mubr.bf16.mxu0 0
      %1196 = vmatmul.mubr.bf16.gmra.mxu0 %v1131
      %v1197 = vpop.f32.mrf.mxu0
      %v1198 = vadd.f32 0.0, %v1197
      %v1199 = vpop.f32.mrf.mxu0
      %v1200 = vpop.f32.mrf.mxu0
      %v1201 = vadd.f32 0.0, %v1200
      %v1202 = vpop.f32.mrf.mxu0
      %1203 = vmatprep.mubr.bf16.mxu0 0
      %1204 = vmatmul.mubr.bf16.gmra.mxu0 %v1132
      %v1205 = vpop.f32.mrf.mxu0
      %v1206 = vadd.f32 0.0, %v1205
      %v1207 = vpop.f32.mrf.mxu0
      %v1208 = vpop.f32.mrf.mxu0
      %v1209 = vadd.f32 0.0, %v1208
      %v1210 = vpop.f32.mrf.mxu0
      %1211 = vmatprep.mubr.bf16.mxu0 0
      %1212 = vmatmul.mubr.bf16.gmra.mxu0 %v1133
      %v1213 = vpop.f32.mrf.mxu0
      %v1214 = vadd.f32 0.0, %v1213
      %v1215 = vpop.f32.mrf.mxu0
      %v1216 = vpop.f32.mrf.mxu0
      %v1217 = vadd.f32 0.0, %v1216
      %v1218 = vpop.f32.mrf.mxu0
      %1219 = vmatprep.mubr.bf16.mxu0 0
      %1220 = vmatmul.mubr.bf16.gmra.mxu0 %v1134
      %v1221 = vpop.f32.mrf.mxu0
      %v1222 = vadd.f32 0.0, %v1221
      %v1223 = vpop.f32.mrf.mxu0
      %v1224 = vpop.f32.mrf.mxu0
      %v1225 = vadd.f32 0.0, %v1224
      %v1226 = vpop.f32.mrf.mxu0
      %1227 = vmatprep.mubr.bf16.mxu0 0
      %1228 = vmatmul.mubr.bf16.gmra.mxu0 %v1135
      %v1229 = vpop.f32.mrf.mxu0
      %v1230 = vadd.f32 0.0, %v1229
      %v1231 = vpop.f32.mrf.mxu0
      %v1232 = vpop.f32.mrf.mxu0
      %v1233 = vadd.f32 0.0, %v1232
      %v1234 = vpop.f32.mrf.mxu0
      %1235 = vmatprep.mubr.bf16.mxu0 0
      %1236 = vmatmul.mubr.bf16.gmra.mxu0 %v1136
      %v1237 = vpop.f32.mrf.mxu0
      %v1238 = vadd.f32 0.0, %v1237
      %v1239 = vpop.f32.mrf.mxu0
      %v1240 = vpop.f32.mrf.mxu0
      %v1241 = vadd.f32 0.0, %v1240
      %v1242 = vpop.f32.mrf.mxu0
      %1243 = vmatprep.mubr.bf16.mxu0 0
      %1244 = vmatmul.mubr.bf16.gmra.mxu0 %v1137
      %v1245 = vpop.f32.mrf.mxu0
      %v1246 = vadd.f32 0.0, %v1245
      %v1247 = vpop.f32.mrf.mxu0
      %v1248 = vpop.f32.mrf.mxu0
      %v1249 = vadd.f32 0.0, %v1248
      %v1250 = vpop.f32.mrf.mxu0
      %1251 = vmatprep.mubr.bf16.mxu0 0
      %1252 = vmatmul.mubr.bf16.gmra.mxu0 %v1138
      %v1253 = vpop.f32.mrf.mxu0
      %v1254 = vadd.f32 0.0, %v1253
      %v1255 = vpop.f32.mrf.mxu0
      %v1256 = vpop.f32.mrf.mxu0
      %v1257 = vadd.f32 0.0, %v1256
      %v1258 = vpop.f32.mrf.mxu0
      %1259 = vdwg.mxu0
      %1276 = vrot.lane.b32.xlu0 %v1198, 8
      %v1277 = vpop.permute.xlu0 %1276
      %1278 = vrot.lane.b32.xlu0 %v1201, 8
      %v1279 = vpop.permute.xlu0 %1278
      %1280 = vrot.lane.b32.xlu0 %v1206, 8
      %v1281 = vpop.permute.xlu0 %1280
      %1282 = vrot.lane.b32.xlu0 %v1209, 8
      %v1283 = vpop.permute.xlu0 %1282
      %1284 = vrot.lane.b32.xlu0 %v1214, 8
      %v1285 = vpop.permute.xlu0 %1284
      %1286 = vrot.lane.b32.xlu0 %v1217, 8
      %v1287 = vpop.permute.xlu0 %1286
      %1288 = vrot.lane.b32.xlu0 %v1222, 8
      %v1289 = vpop.permute.xlu0 %1288
      %1290 = vrot.lane.b32.xlu0 %v1225, 8
      %v1291 = vpop.permute.xlu0 %1290
      %1292 = vrot.lane.b32.xlu0 %v1230, 8
      %v1293 = vpop.permute.xlu0 %1292
      %1294 = vrot.lane.b32.xlu0 %v1233, 8
      %v1295 = vpop.permute.xlu0 %1294
      %1296 = vrot.lane.b32.xlu0 %v1238, 8
      %v1297 = vpop.permute.xlu0 %1296
      %1298 = vrot.lane.b32.xlu0 %v1241, 8
      %v1299 = vpop.permute.xlu0 %1298
      %1300 = vrot.lane.b32.xlu0 %v1246, 8
      %v1301 = vpop.permute.xlu0 %1300
      %1302 = vrot.lane.b32.xlu0 %v1249, 8
      %v1303 = vpop.permute.xlu0 %1302
      %1304 = vrot.lane.b32.xlu0 %v1254, 8
      %v1305 = vpop.permute.xlu0 %1304
      %1306 = vrot.lane.b32.xlu0 %v1257, 8
      %v1307 = vpop.permute.xlu0 %1306
      %vm1324 = vcmask 130112
      %1325 = vst.msk [vmem:[#allocation2] sm:$0xff] %vm1324, %v1277
      %1326 = vst.msk [vmem:[#allocation2 + $0x8] sm:$0xff] %vm1324, %v1279
      %1327 = vst.msk [vmem:[#allocation2 + $0x10] sm:$0xff] %vm1324, %v1281
      %1328 = vst.msk [vmem:[#allocation2 + $0x18] sm:$0xff] %vm1324, %v1283
      %1329 = vst.msk [vmem:[#allocation2 + $0x20] sm:$0xff] %vm1324, %v1285
      %1330 = vst.msk [vmem:[#allocation2 + $0x28] sm:$0xff] %vm1324, %v1287
      %1331 = vst.msk [vmem:[#allocation2 + $0x30] sm:$0xff] %vm1324, %v1289
      %1332 = vst.msk [vmem:[#allocation2 + $0x38] sm:$0xff] %vm1324, %v1291
      %1333 = vst.msk [vmem:[#allocation2 + $0x40] sm:$0xff] %vm1324, %v1293
      %1334 = vst.msk [vmem:[#allocation2 + $0x48] sm:$0xff] %vm1324, %v1295
      %1335 = vst.msk [vmem:[#allocation2 + $0x50] sm:$0xff] %vm1324, %v1297
      %1336 = vst.msk [vmem:[#allocation2 + $0x58] sm:$0xff] %vm1324, %v1299
      %1337 = vst.msk [vmem:[#allocation2 + $0x60] sm:$0xff] %vm1324, %v1301
      %1338 = vst.msk [vmem:[#allocation2 + $0x68] sm:$0xff] %vm1324, %v1303
      %1339 = vst.msk [vmem:[#allocation2 + $0x70] sm:$0xff] %vm1324, %v1305
      %1340 = vst.msk [vmem:[#allocation2 + $0x78] sm:$0xff] %vm1324, %v1307
      %1341 = vrot.lane.b32.xlu0 %v343, 112
      %v1342 = vpop.permute.xlu0 %1341
      %1343 = vrot.lane.b32.xlu0 %v344, 112
      %v1344 = vpop.permute.xlu0 %1343
      %1345 = vrot.lane.b32.xlu0 %v345, 112
      %v1346 = vpop.permute.xlu0 %1345
      %1347 = vrot.lane.b32.xlu0 %v346, 112
      %v1348 = vpop.permute.xlu0 %1347
      %1349 = vrot.lane.b32.xlu0 %v347, 112
      %v1350 = vpop.permute.xlu0 %1349
      %1351 = vrot.lane.b32.xlu0 %v348, 112
      %v1352 = vpop.permute.xlu0 %1351
      %1353 = vrot.lane.b32.xlu0 %v349, 112
      %v1354 = vpop.permute.xlu0 %1353
      %1355 = vrot.lane.b32.xlu0 %v350, 112
      %v1356 = vpop.permute.xlu0 %1355
      %1357 = vrot.lane.b32.xlu0 %v343, 80
      %v1358 = vpop.permute.xlu0 %1357
      %1359 = vrot.lane.b32.xlu0 %v344, 80
      %v1360 = vpop.permute.xlu0 %1359
      %1361 = vrot.lane.b32.xlu0 %v345, 80
      %v1362 = vpop.permute.xlu0 %1361
      %1363 = vrot.lane.b32.xlu0 %v346, 80
      %v1364 = vpop.permute.xlu0 %1363
      %1365 = vrot.lane.b32.xlu0 %v347, 80
      %v1366 = vpop.permute.xlu0 %1365
      %1367 = vrot.lane.b32.xlu0 %v348, 80
      %v1368 = vpop.permute.xlu0 %1367
      %1369 = vrot.lane.b32.xlu0 %v349, 80
      %v1370 = vpop.permute.xlu0 %1369
      %1371 = vrot.lane.b32.xlu0 %v350, 80
      %v1372 = vpop.permute.xlu0 %1371
      %v1374 = vsel %vm375, %v1342, 0
      %v1377 = vsel %vm375, %v1344, 0
      %v1380 = vsel %vm375, %v1346, 0
      %v1383 = vsel %vm375, %v1348, 0
      %v1386 = vsel %vm375, %v1350, 0
      %v1389 = vsel %vm375, %v1352, 0
      %v1392 = vsel %vm375, %v1354, 0
      %v1395 = vsel %vm375, %v1356, 0
      %v1398 = vsel %vm375, %v1358, 0
      %v1401 = vsel %vm375, %v1360, 0
      %v1404 = vsel %vm375, %v1362, 0
      %v1407 = vsel %vm375, %v1364, 0
      %v1410 = vsel %vm375, %v1366, 0
      %v1413 = vsel %vm375, %v1368, 0
      %v1416 = vsel %vm375, %v1370, 0
      %v1419 = vsel %vm375, %v1372, 0
      %1421 = vmatprep.subr.bf16.mxu0 0
      %1422 = vmatpush1.bf16.xpose.msra.mxu0 %v1419
      %1423 = vmatprep.subr.bf16.mxu0 0
      %1424 = vmatpush1.bf16.xpose.msra.mxu0 %v1416
      %1425 = vmatprep.subr.bf16.mxu0 0
      %1426 = vmatpush1.bf16.xpose.msra.mxu0 %v1413
      %1427 = vmatprep.subr.bf16.mxu0 0
      %1428 = vmatpush1.bf16.xpose.msra.mxu0 %v1410
      %1429 = vmatprep.subr.bf16.mxu0 0
      %1430 = vmatpush1.bf16.xpose.msra.mxu0 %v1407
      %1431 = vmatprep.subr.bf16.mxu0 0
      %1432 = vmatpush1.bf16.xpose.msra.mxu0 %v1404
      %1433 = vmatprep.subr.bf16.mxu0 0
      %1434 = vmatpush1.bf16.xpose.msra.mxu0 %v1401
      %1435 = vmatprep.subr.bf16.mxu0 0
      %1436 = vmatpush1.bf16.xpose.msra.mxu0 %v1398
      %1437 = vmatprep.subr.bf16.mxu0 0
      %1438 = vmatpush2.bf16.xpose.msra.mxu0 0
      %1439 = vmatprep.subr.bf16.mxu0 0
      %1440 = vmatpush2.bf16.xpose.msra.mxu0 0
      %1441 = vmatprep.subr.bf16.mxu0 0
      %1442 = vmatpush2.bf16.xpose.msra.mxu0 0
      %1443 = vmatprep.subr.bf16.mxu0 0
      %1444 = vmatpush2.bf16.xpose.msra.mxu0 0
      %1445 = vmatprep.subr.bf16.mxu0 0
      %1446 = vmatpush2.bf16.xpose.msra.mxu0 0
      %1447 = vmatprep.subr.bf16.mxu0 0
      %1448 = vmatpush2.bf16.xpose.msra.mxu0 0
      %1449 = vmatprep.subr.bf16.mxu0 0
      %1450 = vmatpush2.bf16.xpose.msra.mxu0 0
      %1451 = vmatprep.subr.bf16.mxu0 0
      %1452 = vmatpush2.bf16.xpose.msra.mxu0 0
      %1453 = vmatprep.mubr.bf16.mxu0 0
      %1454 = vmatmul.mubr.bf16.gmra.mxu0 %v1374
      %v1455 = vpop.f32.mrf.mxu0
      %v1456 = vadd.f32 %v342, %v1455
      %v1457 = vpop.f32.mrf.mxu0
      %v1458 = vpop.f32.mrf.mxu0
      %v1459 = vadd.f32 %v342, %v1458
      %v1460 = vpop.f32.mrf.mxu0
      %1461 = vmatprep.mubr.bf16.mxu0 0
      %1462 = vmatmul.mubr.bf16.gmra.mxu0 %v1377
      %v1463 = vpop.f32.mrf.mxu0
      %v1464 = vadd.f32 %v342, %v1463
      %v1465 = vpop.f32.mrf.mxu0
      %v1466 = vpop.f32.mrf.mxu0
      %v1467 = vadd.f32 %v342, %v1466
      %v1468 = vpop.f32.mrf.mxu0
      %1469 = vmatprep.mubr.bf16.mxu0 0
      %1470 = vmatmul.mubr.bf16.gmra.mxu0 %v1380
      %v1471 = vpop.f32.mrf.mxu0
      %v1472 = vadd.f32 %v342, %v1471
      %v1473 = vpop.f32.mrf.mxu0
      %v1474 = vpop.f32.mrf.mxu0
      %v1475 = vadd.f32 %v342, %v1474
      %v1476 = vpop.f32.mrf.mxu0
      %1477 = vmatprep.mubr.bf16.mxu0 0
      %1478 = vmatmul.mubr.bf16.gmra.mxu0 %v1383
      %v1479 = vpop.f32.mrf.mxu0
      %v1480 = vadd.f32 %v342, %v1479
      %v1481 = vpop.f32.mrf.mxu0
      %v1482 = vpop.f32.mrf.mxu0
      %v1483 = vadd.f32 %v342, %v1482
      %v1484 = vpop.f32.mrf.mxu0
      %1485 = vmatprep.mubr.bf16.mxu0 0
      %1486 = vmatmul.mubr.bf16.gmra.mxu0 %v1386
      %v1487 = vpop.f32.mrf.mxu0
      %v1488 = vadd.f32 %v342, %v1487
      %v1489 = vpop.f32.mrf.mxu0
      %v1490 = vpop.f32.mrf.mxu0
      %v1491 = vadd.f32 %v342, %v1490
      %v1492 = vpop.f32.mrf.mxu0
      %1493 = vmatprep.mubr.bf16.mxu0 0
      %1494 = vmatmul.mubr.bf16.gmra.mxu0 %v1389
      %v1495 = vpop.f32.mrf.mxu0
      %v1496 = vadd.f32 %v342, %v1495
      %v1497 = vpop.f32.mrf.mxu0
      %v1498 = vpop.f32.mrf.mxu0
      %v1499 = vadd.f32 %v342, %v1498
      %v1500 = vpop.f32.mrf.mxu0
      %1501 = vmatprep.mubr.bf16.mxu0 0
      %1502 = vmatmul.mubr.bf16.gmra.mxu0 %v1392
      %v1503 = vpop.f32.mrf.mxu0
      %v1504 = vadd.f32 %v342, %v1503
      %v1505 = vpop.f32.mrf.mxu0
      %v1506 = vpop.f32.mrf.mxu0
      %v1507 = vadd.f32 %v342, %v1506
      %v1508 = vpop.f32.mrf.mxu0
      %1509 = vmatprep.mubr.bf16.mxu0 0
      %1510 = vmatmul.mubr.bf16.gmra.mxu0 %v1395
      %v1511 = vpop.f32.mrf.mxu0
      %v1512 = vadd.f32 %v342, %v1511
      %v1513 = vpop.f32.mrf.mxu0
      %v1514 = vpop.f32.mrf.mxu0
      %v1515 = vadd.f32 %v342, %v1514
      %v1516 = vpop.f32.mrf.mxu0
      %1517 = vdwg.mxu0
      %1518 = vmax.xlane.f32.xlu0 %v1456
      %v1519 = vpop.xlane.xlu0 %1518
      %1520 = vmax.xlane.f32.xlu0 %v1459
      %v1521 = vpop.xlane.xlu0 %1520
      %1522 = vmax.xlane.f32.xlu0 %v1464
      %v1523 = vpop.xlane.xlu0 %1522
      %1524 = vmax.xlane.f32.xlu0 %v1467
      %v1525 = vpop.xlane.xlu0 %1524
      %1526 = vmax.xlane.f32.xlu0 %v1472
      %v1527 = vpop.xlane.xlu0 %1526
      %1528 = vmax.xlane.f32.xlu0 %v1475
      %v1529 = vpop.xlane.xlu0 %1528
      %1530 = vmax.xlane.f32.xlu0 %v1480
      %v1531 = vpop.xlane.xlu0 %1530
      %1532 = vmax.xlane.f32.xlu0 %v1483
      %v1533 = vpop.xlane.xlu0 %1532
      %1534 = vmax.xlane.f32.xlu0 %v1488
      %v1535 = vpop.xlane.xlu0 %1534
      %1536 = vmax.xlane.f32.xlu0 %v1491
      %v1537 = vpop.xlane.xlu0 %1536
      %1538 = vmax.xlane.f32.xlu0 %v1496
      %v1539 = vpop.xlane.xlu0 %1538
      %1540 = vmax.xlane.f32.xlu0 %v1499
      %v1541 = vpop.xlane.xlu0 %1540
      %1542 = vmax.xlane.f32.xlu0 %v1504
      %v1543 = vpop.xlane.xlu0 %1542
      %1544 = vmax.xlane.f32.xlu0 %v1507
      %v1545 = vpop.xlane.xlu0 %1544
      %1546 = vmax.xlane.f32.xlu0 %v1512
      %v1547 = vpop.xlane.xlu0 %1546
      %1548 = vmax.xlane.f32.xlu0 %v1515
      %v1549 = vpop.xlane.xlu0 %1548
      %v1550 = vsub.f32 %v1456, %v1519
      %v1551 = vsub.f32 %v1459, %v1521
      %v1552 = vsub.f32 %v1464, %v1523
      %v1553 = vsub.f32 %v1467, %v1525
      %v1554 = vsub.f32 %v1472, %v1527
      %v1555 = vsub.f32 %v1475, %v1529
      %v1556 = vsub.f32 %v1480, %v1531
      %v1557 = vsub.f32 %v1483, %v1533
      %v1558 = vsub.f32 %v1488, %v1535
      %v1559 = vsub.f32 %v1491, %v1537
      %v1560 = vsub.f32 %v1496, %v1539
      %v1561 = vsub.f32 %v1499, %v1541
      %v1562 = vsub.f32 %v1504, %v1543
      %v1563 = vsub.f32 %v1507, %v1545
      %v1564 = vsub.f32 %v1512, %v1547
      %v1565 = vsub.f32 %v1515, %v1549
      %v1566 = vmul.f32 %v1550, 1.442695
      %v1567 = vpow.pop %v1566
      %v1568 = vmul.f32 %v1551, 1.442695
      %v1569 = vpow.pop %v1568
      %v1570 = vmul.f32 %v1552, 1.442695
      %v1571 = vpow.pop %v1570
      %v1572 = vmul.f32 %v1553, 1.442695
      %v1573 = vpow.pop %v1572
      %v1574 = vmul.f32 %v1554, 1.442695
      %v1575 = vpow.pop %v1574
      %v1576 = vmul.f32 %v1555, 1.442695
      %v1577 = vpow.pop %v1576
      %v1578 = vmul.f32 %v1556, 1.442695
      %v1579 = vpow.pop %v1578
      %v1580 = vmul.f32 %v1557, 1.442695
      %v1581 = vpow.pop %v1580
      %v1582 = vmul.f32 %v1558, 1.442695
      %v1583 = vpow.pop %v1582
      %v1584 = vmul.f32 %v1559, 1.442695
      %v1585 = vpow.pop %v1584
      %v1586 = vmul.f32 %v1560, 1.442695
      %v1587 = vpow.pop %v1586
      %v1588 = vmul.f32 %v1561, 1.442695
      %v1589 = vpow.pop %v1588
      %v1590 = vmul.f32 %v1562, 1.442695
      %v1591 = vpow.pop %v1590
      %v1592 = vmul.f32 %v1563, 1.442695
      %v1593 = vpow.pop %v1592
      %v1594 = vmul.f32 %v1564, 1.442695
      %v1595 = vpow.pop %v1594
      %v1596 = vmul.f32 %v1565, 1.442695
      %v1597 = vpow.pop %v1596
      %1598 = vadd.xlane.f32.xlu0 %v1567
      %v1599 = vpop.xlane.xlu0 %1598
      %1600 = vadd.xlane.f32.xlu0 %v1569
      %v1601 = vpop.xlane.xlu0 %1600
      %1602 = vadd.xlane.f32.xlu0 %v1571
      %v1603 = vpop.xlane.xlu0 %1602
      %1604 = vadd.xlane.f32.xlu0 %v1573
      %v1605 = vpop.xlane.xlu0 %1604
      %1606 = vadd.xlane.f32.xlu0 %v1575
      %v1607 = vpop.xlane.xlu0 %1606
      %1608 = vadd.xlane.f32.xlu0 %v1577
      %v1609 = vpop.xlane.xlu0 %1608
      %1610 = vadd.xlane.f32.xlu0 %v1579
      %v1611 = vpop.xlane.xlu0 %1610
      %1612 = vadd.xlane.f32.xlu0 %v1581
      %v1613 = vpop.xlane.xlu0 %1612
      %1614 = vadd.xlane.f32.xlu0 %v1583
      %v1615 = vpop.xlane.xlu0 %1614
      %1616 = vadd.xlane.f32.xlu0 %v1585
      %v1617 = vpop.xlane.xlu0 %1616
      %1618 = vadd.xlane.f32.xlu0 %v1587
      %v1619 = vpop.xlane.xlu0 %1618
      %1620 = vadd.xlane.f32.xlu0 %v1589
      %v1621 = vpop.xlane.xlu0 %1620
      %1622 = vadd.xlane.f32.xlu0 %v1591
      %v1623 = vpop.xlane.xlu0 %1622
      %1624 = vadd.xlane.f32.xlu0 %v1593
      %v1625 = vpop.xlane.xlu0 %1624
      %1626 = vadd.xlane.f32.xlu0 %v1595
      %v1627 = vpop.xlane.xlu0 %1626
      %1628 = vadd.xlane.f32.xlu0 %v1597
      %v1629 = vpop.xlane.xlu0 %1628
      %v1630 = vrcp.pop %v1599
      %v1631 = vrcp.pop %v1601
      %v1632 = vrcp.pop %v1603
      %v1633 = vrcp.pop %v1605
      %v1634 = vrcp.pop %v1607
      %v1635 = vrcp.pop %v1609
      %v1636 = vrcp.pop %v1611
      %v1637 = vrcp.pop %v1613
      %v1638 = vrcp.pop %v1615
      %v1639 = vrcp.pop %v1617
      %v1640 = vrcp.pop %v1619
      %v1641 = vrcp.pop %v1621
      %v1642 = vrcp.pop %v1623
      %v1643 = vrcp.pop %v1625
      %v1644 = vrcp.pop %v1627
      %v1645 = vrcp.pop %v1629
      %v1646 = vmul.f32 %v1567, %v1630
      %v1647 = vmul.f32 %v1569, %v1631
      %v1648 = vmul.f32 %v1571, %v1632
      %v1649 = vmul.f32 %v1573, %v1633
      %v1650 = vmul.f32 %v1575, %v1634
      %v1651 = vmul.f32 %v1577, %v1635
      %v1652 = vmul.f32 %v1579, %v1636
      %v1653 = vmul.f32 %v1581, %v1637
      %v1654 = vmul.f32 %v1583, %v1638
      %v1655 = vmul.f32 %v1585, %v1639
      %v1656 = vmul.f32 %v1587, %v1640
      %v1657 = vmul.f32 %v1589, %v1641
      %v1658 = vmul.f32 %v1591, %v1642
      %v1659 = vmul.f32 %v1593, %v1643
      %v1660 = vmul.f32 %v1595, %v1644
      %v1661 = vmul.f32 %v1597, %v1645
      %v1662 = vpack.c.bf16 %v1647, %v1646
      %v1663 = vpack.c.bf16 %v1649, %v1648
      %v1664 = vpack.c.bf16 %v1651, %v1650
      %v1665 = vpack.c.bf16 %v1653, %v1652
      %v1666 = vpack.c.bf16 %v1655, %v1654
      %v1667 = vpack.c.bf16 %v1657, %v1656
      %v1668 = vpack.c.bf16 %v1659, %v1658
      %v1669 = vpack.c.bf16 %v1661, %v1660
      %1670 = vrot.lane.b32.xlu0 %v343, 48
      %v1671 = vpop.permute.xlu0 %1670
      %1672 = vrot.lane.b32.xlu0 %v344, 48
      %v1673 = vpop.permute.xlu0 %1672
      %1674 = vrot.lane.b32.xlu0 %v345, 48
      %v1675 = vpop.permute.xlu0 %1674
      %1676 = vrot.lane.b32.xlu0 %v346, 48
      %v1677 = vpop.permute.xlu0 %1676
      %1678 = vrot.lane.b32.xlu0 %v347, 48
      %v1679 = vpop.permute.xlu0 %1678
      %1680 = vrot.lane.b32.xlu0 %v348, 48
      %v1681 = vpop.permute.xlu0 %1680
      %1682 = vrot.lane.b32.xlu0 %v349, 48
      %v1683 = vpop.permute.xlu0 %1682
      %1684 = vrot.lane.b32.xlu0 %v350, 48
      %v1685 = vpop.permute.xlu0 %1684
      %1694 = vmatprep.subr.bf16.mxu0 0
      %1695 = vmatpush1.bf16.msra.mxu0 %v1685
      %1696 = vmatprep.subr.bf16.mxu0 0
      %1697 = vmatpush1.bf16.msra.mxu0 %v1683
      %1698 = vmatprep.subr.bf16.mxu0 0
      %1699 = vmatpush1.bf16.msra.mxu0 %v1681
      %1700 = vmatprep.subr.bf16.mxu0 0
      %1701 = vmatpush1.bf16.msra.mxu0 %v1679
      %1702 = vmatprep.subr.bf16.mxu0 0
      %1703 = vmatpush1.bf16.msra.mxu0 %v1677
      %1704 = vmatprep.subr.bf16.mxu0 0
      %1705 = vmatpush1.bf16.msra.mxu0 %v1675
      %1706 = vmatprep.subr.bf16.mxu0 0
      %1707 = vmatpush1.bf16.msra.mxu0 %v1673
      %1708 = vmatprep.subr.bf16.mxu0 0
      %1709 = vmatpush1.bf16.msra.mxu0 %v1671
      %1710 = vmatprep.subr.bf16.mxu0 0
      %1711 = vmatpush2.bf16.msra.mxu0 0
      %1712 = vmatprep.subr.bf16.mxu0 0
      %1713 = vmatpush2.bf16.msra.mxu0 0
      %1714 = vmatprep.subr.bf16.mxu0 0
      %1715 = vmatpush2.bf16.msra.mxu0 0
      %1716 = vmatprep.subr.bf16.mxu0 0
      %1717 = vmatpush2.bf16.msra.mxu0 0
      %1718 = vmatprep.subr.bf16.mxu0 0
      %1719 = vmatpush2.bf16.msra.mxu0 0
      %1720 = vmatprep.subr.bf16.mxu0 0
      %1721 = vmatpush2.bf16.msra.mxu0 0
      %1722 = vmatprep.subr.bf16.mxu0 0
      %1723 = vmatpush2.bf16.msra.mxu0 0
      %1724 = vmatprep.subr.bf16.mxu0 0
      %1725 = vmatpush2.bf16.msra.mxu0 0
      %1726 = vmatprep.mubr.bf16.mxu0 0
      %1727 = vmatmul.mubr.bf16.gmra.mxu0 %v1662
      %v1728 = vpop.f32.mrf.mxu0
      %v1729 = vadd.f32 0.0, %v1728
      %v1730 = vpop.f32.mrf.mxu0
      %v1731 = vpop.f32.mrf.mxu0
      %v1732 = vadd.f32 0.0, %v1731
      %v1733 = vpop.f32.mrf.mxu0
      %1734 = vmatprep.mubr.bf16.mxu0 0
      %1735 = vmatmul.mubr.bf16.gmra.mxu0 %v1663
      %v1736 = vpop.f32.mrf.mxu0
      %v1737 = vadd.f32 0.0, %v1736
      %v1738 = vpop.f32.mrf.mxu0
      %v1739 = vpop.f32.mrf.mxu0
      %v1740 = vadd.f32 0.0, %v1739
      %v1741 = vpop.f32.mrf.mxu0
      %1742 = vmatprep.mubr.bf16.mxu0 0
      %1743 = vmatmul.mubr.bf16.gmra.mxu0 %v1664
      %v1744 = vpop.f32.mrf.mxu0
      %v1745 = vadd.f32 0.0, %v1744
      %v1746 = vpop.f32.mrf.mxu0
      %v1747 = vpop.f32.mrf.mxu0
      %v1748 = vadd.f32 0.0, %v1747
      %v1749 = vpop.f32.mrf.mxu0
      %1750 = vmatprep.mubr.bf16.mxu0 0
      %1751 = vmatmul.mubr.bf16.gmra.mxu0 %v1665
      %v1752 = vpop.f32.mrf.mxu0
      %v1753 = vadd.f32 0.0, %v1752
      %v1754 = vpop.f32.mrf.mxu0
      %v1755 = vpop.f32.mrf.mxu0
      %v1756 = vadd.f32 0.0, %v1755
      %v1757 = vpop.f32.mrf.mxu0
      %1758 = vmatprep.mubr.bf16.mxu0 0
      %1759 = vmatmul.mubr.bf16.gmra.mxu0 %v1666
      %v1760 = vpop.f32.mrf.mxu0
      %v1761 = vadd.f32 0.0, %v1760
      %v1762 = vpop.f32.mrf.mxu0
      %v1763 = vpop.f32.mrf.mxu0
      %v1764 = vadd.f32 0.0, %v1763
      %v1765 = vpop.f32.mrf.mxu0
      %1766 = vmatprep.mubr.bf16.mxu0 0
      %1767 = vmatmul.mubr.bf16.gmra.mxu0 %v1667
      %v1768 = vpop.f32.mrf.mxu0
      %v1769 = vadd.f32 0.0, %v1768
      %v1770 = vpop.f32.mrf.mxu0
      %v1771 = vpop.f32.mrf.mxu0
      %v1772 = vadd.f32 0.0, %v1771
      %v1773 = vpop.f32.mrf.mxu0
      %1774 = vmatprep.mubr.bf16.mxu0 0
      %1775 = vmatmul.mubr.bf16.gmra.mxu0 %v1668
      %v1776 = vpop.f32.mrf.mxu0
      %v1777 = vadd.f32 0.0, %v1776
      %v1778 = vpop.f32.mrf.mxu0
      %v1779 = vpop.f32.mrf.mxu0
      %v1780 = vadd.f32 0.0, %v1779
      %v1781 = vpop.f32.mrf.mxu0
      %1782 = vmatprep.mubr.bf16.mxu0 0
      %1783 = vmatmul.mubr.bf16.gmra.mxu0 %v1669
      %v1784 = vpop.f32.mrf.mxu0
      %v1785 = vadd.f32 0.0, %v1784
      %v1786 = vpop.f32.mrf.mxu0
      %v1787 = vpop.f32.mrf.mxu0
      %v1788 = vadd.f32 0.0, %v1787
      %v1789 = vpop.f32.mrf.mxu0
      %1790 = vdwg.mxu0
      %1807 = vrot.lane.b32.xlu0 %v1729, 16
      %v1808 = vpop.permute.xlu0 %1807
      %1809 = vrot.lane.b32.xlu0 %v1732, 16
      %v1810 = vpop.permute.xlu0 %1809
      %1811 = vrot.lane.b32.xlu0 %v1737, 16
      %v1812 = vpop.permute.xlu0 %1811
      %1813 = vrot.lane.b32.xlu0 %v1740, 16
      %v1814 = vpop.permute.xlu0 %1813
      %1815 = vrot.lane.b32.xlu0 %v1745, 16
      %v1816 = vpop.permute.xlu0 %1815
      %1817 = vrot.lane.b32.xlu0 %v1748, 16
      %v1818 = vpop.permute.xlu0 %1817
      %1819 = vrot.lane.b32.xlu0 %v1753, 16
      %v1820 = vpop.permute.xlu0 %1819
      %1821 = vrot.lane.b32.xlu0 %v1756, 16
      %v1822 = vpop.permute.xlu0 %1821
      %1823 = vrot.lane.b32.xlu0 %v1761, 16
      %v1824 = vpop.permute.xlu0 %1823
      %1825 = vrot.lane.b32.xlu0 %v1764, 16
      %v1826 = vpop.permute.xlu0 %1825
      %1827 = vrot.lane.b32.xlu0 %v1769, 16
      %v1828 = vpop.permute.xlu0 %1827
      %1829 = vrot.lane.b32.xlu0 %v1772, 16
      %v1830 = vpop.permute.xlu0 %1829
      %1831 = vrot.lane.b32.xlu0 %v1777, 16
      %v1832 = vpop.permute.xlu0 %1831
      %1833 = vrot.lane.b32.xlu0 %v1780, 16
      %v1834 = vpop.permute.xlu0 %1833
      %1835 = vrot.lane.b32.xlu0 %v1785, 16
      %v1836 = vpop.permute.xlu0 %1835
      %1837 = vrot.lane.b32.xlu0 %v1788, 16
      %v1838 = vpop.permute.xlu0 %1837
      %vm1855 = vcmask 195712
      %1856 = vst.msk [vmem:[#allocation2] sm:$0xff] %vm1855, %v1808
      %1857 = vst.msk [vmem:[#allocation2 + $0x8] sm:$0xff] %vm1855, %v1810
      %1858 = vst.msk [vmem:[#allocation2 + $0x10] sm:$0xff] %vm1855, %v1812
      %1859 = vst.msk [vmem:[#allocation2 + $0x18] sm:$0xff] %vm1855, %v1814
      %1860 = vst.msk [vmem:[#allocation2 + $0x20] sm:$0xff] %vm1855, %v1816
      %1861 = vst.msk [vmem:[#allocation2 + $0x28] sm:$0xff] %vm1855, %v1818
      %1862 = vst.msk [vmem:[#allocation2 + $0x30] sm:$0xff] %vm1855, %v1820
      %1863 = vst.msk [vmem:[#allocation2 + $0x38] sm:$0xff] %vm1855, %v1822
      %1864 = vst.msk [vmem:[#allocation2 + $0x40] sm:$0xff] %vm1855, %v1824
      %1865 = vst.msk [vmem:[#allocation2 + $0x48] sm:$0xff] %vm1855, %v1826
      %1866 = vst.msk [vmem:[#allocation2 + $0x50] sm:$0xff] %vm1855, %v1828
      %1867 = vst.msk [vmem:[#allocation2 + $0x58] sm:$0xff] %vm1855, %v1830
      %1868 = vst.msk [vmem:[#allocation2 + $0x60] sm:$0xff] %vm1855, %v1832
      %1869 = vst.msk [vmem:[#allocation2 + $0x68] sm:$0xff] %vm1855, %v1834
      %1870 = vst.msk [vmem:[#allocation2 + $0x70] sm:$0xff] %vm1855, %v1836
      %1871 = vst.msk [vmem:[#allocation2 + $0x78] sm:$0xff] %vm1855, %v1838
      %1872 = vrot.lane.b32.xlu0 %v343, 104
      %v1873 = vpop.permute.xlu0 %1872
      %1874 = vrot.lane.b32.xlu0 %v344, 104
      %v1875 = vpop.permute.xlu0 %1874
      %1876 = vrot.lane.b32.xlu0 %v345, 104
      %v1877 = vpop.permute.xlu0 %1876
      %1878 = vrot.lane.b32.xlu0 %v346, 104
      %v1879 = vpop.permute.xlu0 %1878
      %1880 = vrot.lane.b32.xlu0 %v347, 104
      %v1881 = vpop.permute.xlu0 %1880
      %1882 = vrot.lane.b32.xlu0 %v348, 104
      %v1883 = vpop.permute.xlu0 %1882
      %1884 = vrot.lane.b32.xlu0 %v349, 104
      %v1885 = vpop.permute.xlu0 %1884
      %1886 = vrot.lane.b32.xlu0 %v350, 104
      %v1887 = vpop.permute.xlu0 %1886
      %1888 = vrot.lane.b32.xlu0 %v343, 72
      %v1889 = vpop.permute.xlu0 %1888
      %1890 = vrot.lane.b32.xlu0 %v344, 72
      %v1891 = vpop.permute.xlu0 %1890
      %1892 = vrot.lane.b32.xlu0 %v345, 72
      %v1893 = vpop.permute.xlu0 %1892
      %1894 = vrot.lane.b32.xlu0 %v346, 72
      %v1895 = vpop.permute.xlu0 %1894
      %1896 = vrot.lane.b32.xlu0 %v347, 72
      %v1897 = vpop.permute.xlu0 %1896
      %1898 = vrot.lane.b32.xlu0 %v348, 72
      %v1899 = vpop.permute.xlu0 %1898
      %1900 = vrot.lane.b32.xlu0 %v349, 72
      %v1901 = vpop.permute.xlu0 %1900
      %1902 = vrot.lane.b32.xlu0 %v350, 72
      %v1903 = vpop.permute.xlu0 %1902
      %v1905 = vsel %vm375, %v1873, 0
      %v1908 = vsel %vm375, %v1875, 0
      %v1911 = vsel %vm375, %v1877, 0
      %v1914 = vsel %vm375, %v1879, 0
      %v1917 = vsel %vm375, %v1881, 0
      %v1920 = vsel %vm375, %v1883, 0
      %v1923 = vsel %vm375, %v1885, 0
      %v1926 = vsel %vm375, %v1887, 0
      %v1929 = vsel %vm375, %v1889, 0
      %v1932 = vsel %vm375, %v1891, 0
      %v1935 = vsel %vm375, %v1893, 0
      %v1938 = vsel %vm375, %v1895, 0
      %v1941 = vsel %vm375, %v1897, 0
      %v1944 = vsel %vm375, %v1899, 0
      %v1947 = vsel %vm375, %v1901, 0
      %v1950 = vsel %vm375, %v1903, 0
      %1952 = vmatprep.subr.bf16.mxu0 0
      %1953 = vmatpush1.bf16.xpose.msra.mxu0 %v1950
      %1954 = vmatprep.subr.bf16.mxu0 0
      %1955 = vmatpush1.bf16.xpose.msra.mxu0 %v1947
      %1956 = vmatprep.subr.bf16.mxu0 0
      %1957 = vmatpush1.bf16.xpose.msra.mxu0 %v1944
      %1958 = vmatprep.subr.bf16.mxu0 0
      %1959 = vmatpush1.bf16.xpose.msra.mxu0 %v1941
      %1960 = vmatprep.subr.bf16.mxu0 0
      %1961 = vmatpush1.bf16.xpose.msra.mxu0 %v1938
      %1962 = vmatprep.subr.bf16.mxu0 0
      %1963 = vmatpush1.bf16.xpose.msra.mxu0 %v1935
      %1964 = vmatprep.subr.bf16.mxu0 0
      %1965 = vmatpush1.bf16.xpose.msra.mxu0 %v1932
      %1966 = vmatprep.subr.bf16.mxu0 0
      %1967 = vmatpush1.bf16.xpose.msra.mxu0 %v1929
      %1968 = vmatprep.subr.bf16.mxu0 0
      %1969 = vmatpush2.bf16.xpose.msra.mxu0 0
      %1970 = vmatprep.subr.bf16.mxu0 0
      %1971 = vmatpush2.bf16.xpose.msra.mxu0 0
      %1972 = vmatprep.subr.bf16.mxu0 0
      %1973 = vmatpush2.bf16.xpose.msra.mxu0 0
      %1974 = vmatprep.subr.bf16.mxu0 0
      %1975 = vmatpush2.bf16.xpose.msra.mxu0 0
      %1976 = vmatprep.subr.bf16.mxu0 0
      %1977 = vmatpush2.bf16.xpose.msra.mxu0 0
      %1978 = vmatprep.subr.bf16.mxu0 0
      %1979 = vmatpush2.bf16.xpose.msra.mxu0 0
      %1980 = vmatprep.subr.bf16.mxu0 0
      %1981 = vmatpush2.bf16.xpose.msra.mxu0 0
      %1982 = vmatprep.subr.bf16.mxu0 0
      %1983 = vmatpush2.bf16.xpose.msra.mxu0 0
      %1984 = vmatprep.mubr.bf16.mxu0 0
      %1985 = vmatmul.mubr.bf16.gmra.mxu0 %v1905
      %v1986 = vpop.f32.mrf.mxu0
      %v1987 = vadd.f32 %v342, %v1986
      %v1988 = vpop.f32.mrf.mxu0
      %v1989 = vpop.f32.mrf.mxu0
      %v1990 = vadd.f32 %v342, %v1989
      %v1991 = vpop.f32.mrf.mxu0
      %1992 = vmatprep.mubr.bf16.mxu0 0
      %1993 = vmatmul.mubr.bf16.gmra.mxu0 %v1908
      %v1994 = vpop.f32.mrf.mxu0
      %v1995 = vadd.f32 %v342, %v1994
      %v1996 = vpop.f32.mrf.mxu0
      %v1997 = vpop.f32.mrf.mxu0
      %v1998 = vadd.f32 %v342, %v1997
      %v1999 = vpop.f32.mrf.mxu0
      %2000 = vmatprep.mubr.bf16.mxu0 0
      %2001 = vmatmul.mubr.bf16.gmra.mxu0 %v1911
      %v2002 = vpop.f32.mrf.mxu0
      %v2003 = vadd.f32 %v342, %v2002
      %v2004 = vpop.f32.mrf.mxu0
      %v2005 = vpop.f32.mrf.mxu0
      %v2006 = vadd.f32 %v342, %v2005
      %v2007 = vpop.f32.mrf.mxu0
      %2008 = vmatprep.mubr.bf16.mxu0 0
      %2009 = vmatmul.mubr.bf16.gmra.mxu0 %v1914
      %v2010 = vpop.f32.mrf.mxu0
      %v2011 = vadd.f32 %v342, %v2010
      %v2012 = vpop.f32.mrf.mxu0
      %v2013 = vpop.f32.mrf.mxu0
      %v2014 = vadd.f32 %v342, %v2013
      %v2015 = vpop.f32.mrf.mxu0
      %2016 = vmatprep.mubr.bf16.mxu0 0
      %2017 = vmatmul.mubr.bf16.gmra.mxu0 %v1917
      %v2018 = vpop.f32.mrf.mxu0
      %v2019 = vadd.f32 %v342, %v2018
      %v2020 = vpop.f32.mrf.mxu0
      %v2021 = vpop.f32.mrf.mxu0
      %v2022 = vadd.f32 %v342, %v2021
      %v2023 = vpop.f32.mrf.mxu0
      %2024 = vmatprep.mubr.bf16.mxu0 0
      %2025 = vmatmul.mubr.bf16.gmra.mxu0 %v1920
      %v2026 = vpop.f32.mrf.mxu0
      %v2027 = vadd.f32 %v342, %v2026
      %v2028 = vpop.f32.mrf.mxu0
      %v2029 = vpop.f32.mrf.mxu0
      %v2030 = vadd.f32 %v342, %v2029
      %v2031 = vpop.f32.mrf.mxu0
      %2032 = vmatprep.mubr.bf16.mxu0 0
      %2033 = vmatmul.mubr.bf16.gmra.mxu0 %v1923
      %v2034 = vpop.f32.mrf.mxu0
      %v2035 = vadd.f32 %v342, %v2034
      %v2036 = vpop.f32.mrf.mxu0
      %v2037 = vpop.f32.mrf.mxu0
      %v2038 = vadd.f32 %v342, %v2037
      %v2039 = vpop.f32.mrf.mxu0
      %2040 = vmatprep.mubr.bf16.mxu0 0
      %2041 = vmatmul.mubr.bf16.gmra.mxu0 %v1926
      %v2042 = vpop.f32.mrf.mxu0
      %v2043 = vadd.f32 %v342, %v2042
      %v2044 = vpop.f32.mrf.mxu0
      %v2045 = vpop.f32.mrf.mxu0
      %v2046 = vadd.f32 %v342, %v2045
      %v2047 = vpop.f32.mrf.mxu0
      %2048 = vdwg.mxu0
      %2049 = vmax.xlane.f32.xlu0 %v1987
      %v2050 = vpop.xlane.xlu0 %2049
      %2051 = vmax.xlane.f32.xlu0 %v1990
      %v2052 = vpop.xlane.xlu0 %2051
      %2053 = vmax.xlane.f32.xlu0 %v1995
      %v2054 = vpop.xlane.xlu0 %2053
      %2055 = vmax.xlane.f32.xlu0 %v1998
      %v2056 = vpop.xlane.xlu0 %2055
      %2057 = vmax.xlane.f32.xlu0 %v2003
      %v2058 = vpop.xlane.xlu0 %2057
      %2059 = vmax.xlane.f32.xlu0 %v2006
      %v2060 = vpop.xlane.xlu0 %2059
      %2061 = vmax.xlane.f32.xlu0 %v2011
      %v2062 = vpop.xlane.xlu0 %2061
      %2063 = vmax.xlane.f32.xlu0 %v2014
      %v2064 = vpop.xlane.xlu0 %2063
      %2065 = vmax.xlane.f32.xlu0 %v2019
      %v2066 = vpop.xlane.xlu0 %2065
      %2067 = vmax.xlane.f32.xlu0 %v2022
      %v2068 = vpop.xlane.xlu0 %2067
      %2069 = vmax.xlane.f32.xlu0 %v2027
      %v2070 = vpop.xlane.xlu0 %2069
      %2071 = vmax.xlane.f32.xlu0 %v2030
      %v2072 = vpop.xlane.xlu0 %2071
      %2073 = vmax.xlane.f32.xlu0 %v2035
      %v2074 = vpop.xlane.xlu0 %2073
      %2075 = vmax.xlane.f32.xlu0 %v2038
      %v2076 = vpop.xlane.xlu0 %2075
      %2077 = vmax.xlane.f32.xlu0 %v2043
      %v2078 = vpop.xlane.xlu0 %2077
      %2079 = vmax.xlane.f32.xlu0 %v2046
      %v2080 = vpop.xlane.xlu0 %2079
      %v2081 = vsub.f32 %v1987, %v2050
      %v2082 = vsub.f32 %v1990, %v2052
      %v2083 = vsub.f32 %v1995, %v2054
      %v2084 = vsub.f32 %v1998, %v2056
      %v2085 = vsub.f32 %v2003, %v2058
      %v2086 = vsub.f32 %v2006, %v2060
      %v2087 = vsub.f32 %v2011, %v2062
      %v2088 = vsub.f32 %v2014, %v2064
      %v2089 = vsub.f32 %v2019, %v2066
      %v2090 = vsub.f32 %v2022, %v2068
      %v2091 = vsub.f32 %v2027, %v2070
      %v2092 = vsub.f32 %v2030, %v2072
      %v2093 = vsub.f32 %v2035, %v2074
      %v2094 = vsub.f32 %v2038, %v2076
      %v2095 = vsub.f32 %v2043, %v2078
      %v2096 = vsub.f32 %v2046, %v2080
      %v2097 = vmul.f32 %v2081, 1.442695
      %v2098 = vpow.pop %v2097
      %v2099 = vmul.f32 %v2082, 1.442695
      %v2100 = vpow.pop %v2099
      %v2101 = vmul.f32 %v2083, 1.442695
      %v2102 = vpow.pop %v2101
      %v2103 = vmul.f32 %v2084, 1.442695
      %v2104 = vpow.pop %v2103
      %v2105 = vmul.f32 %v2085, 1.442695
      %v2106 = vpow.pop %v2105
      %v2107 = vmul.f32 %v2086, 1.442695
      %v2108 = vpow.pop %v2107
      %v2109 = vmul.f32 %v2087, 1.442695
      %v2110 = vpow.pop %v2109
      %v2111 = vmul.f32 %v2088, 1.442695
      %v2112 = vpow.pop %v2111
      %v2113 = vmul.f32 %v2089, 1.442695
      %v2114 = vpow.pop %v2113
      %v2115 = vmul.f32 %v2090, 1.442695
      %v2116 = vpow.pop %v2115
      %v2117 = vmul.f32 %v2091, 1.442695
      %v2118 = vpow.pop %v2117
      %v2119 = vmul.f32 %v2092, 1.442695
      %v2120 = vpow.pop %v2119
      %v2121 = vmul.f32 %v2093, 1.442695
      %v2122 = vpow.pop %v2121
      %v2123 = vmul.f32 %v2094, 1.442695
      %v2124 = vpow.pop %v2123
      %v2125 = vmul.f32 %v2095, 1.442695
      %v2126 = vpow.pop %v2125
      %v2127 = vmul.f32 %v2096, 1.442695
      %v2128 = vpow.pop %v2127
      %2129 = vadd.xlane.f32.xlu0 %v2098
      %v2130 = vpop.xlane.xlu0 %2129
      %2131 = vadd.xlane.f32.xlu0 %v2100
      %v2132 = vpop.xlane.xlu0 %2131
      %2133 = vadd.xlane.f32.xlu0 %v2102
      %v2134 = vpop.xlane.xlu0 %2133
      %2135 = vadd.xlane.f32.xlu0 %v2104
      %v2136 = vpop.xlane.xlu0 %2135
      %2137 = vadd.xlane.f32.xlu0 %v2106
      %v2138 = vpop.xlane.xlu0 %2137
      %2139 = vadd.xlane.f32.xlu0 %v2108
      %v2140 = vpop.xlane.xlu0 %2139
      %2141 = vadd.xlane.f32.xlu0 %v2110
      %v2142 = vpop.xlane.xlu0 %2141
      %2143 = vadd.xlane.f32.xlu0 %v2112
      %v2144 = vpop.xlane.xlu0 %2143
      %2145 = vadd.xlane.f32.xlu0 %v2114
      %v2146 = vpop.xlane.xlu0 %2145
      %2147 = vadd.xlane.f32.xlu0 %v2116
      %v2148 = vpop.xlane.xlu0 %2147
      %2149 = vadd.xlane.f32.xlu0 %v2118
      %v2150 = vpop.xlane.xlu0 %2149
      %2151 = vadd.xlane.f32.xlu0 %v2120
      %v2152 = vpop.xlane.xlu0 %2151
      %2153 = vadd.xlane.f32.xlu0 %v2122
      %v2154 = vpop.xlane.xlu0 %2153
      %2155 = vadd.xlane.f32.xlu0 %v2124
      %v2156 = vpop.xlane.xlu0 %2155
      %2157 = vadd.xlane.f32.xlu0 %v2126
      %v2158 = vpop.xlane.xlu0 %2157
      %2159 = vadd.xlane.f32.xlu0 %v2128
      %v2160 = vpop.xlane.xlu0 %2159
      %v2161 = vrcp.pop %v2130
      %v2162 = vrcp.pop %v2132
      %v2163 = vrcp.pop %v2134
      %v2164 = vrcp.pop %v2136
      %v2165 = vrcp.pop %v2138
      %v2166 = vrcp.pop %v2140
      %v2167 = vrcp.pop %v2142
      %v2168 = vrcp.pop %v2144
      %v2169 = vrcp.pop %v2146
      %v2170 = vrcp.pop %v2148
      %v2171 = vrcp.pop %v2150
      %v2172 = vrcp.pop %v2152
      %v2173 = vrcp.pop %v2154
      %v2174 = vrcp.pop %v2156
      %v2175 = vrcp.pop %v2158
      %v2176 = vrcp.pop %v2160
      %v2177 = vmul.f32 %v2098, %v2161
      %v2178 = vmul.f32 %v2100, %v2162
      %v2179 = vmul.f32 %v2102, %v2163
      %v2180 = vmul.f32 %v2104, %v2164
      %v2181 = vmul.f32 %v2106, %v2165
      %v2182 = vmul.f32 %v2108, %v2166
      %v2183 = vmul.f32 %v2110, %v2167
      %v2184 = vmul.f32 %v2112, %v2168
      %v2185 = vmul.f32 %v2114, %v2169
      %v2186 = vmul.f32 %v2116, %v2170
      %v2187 = vmul.f32 %v2118, %v2171
      %v2188 = vmul.f32 %v2120, %v2172
      %v2189 = vmul.f32 %v2122, %v2173
      %v2190 = vmul.f32 %v2124, %v2174
      %v2191 = vmul.f32 %v2126, %v2175
      %v2192 = vmul.f32 %v2128, %v2176
      %v2193 = vpack.c.bf16 %v2178, %v2177
      %v2194 = vpack.c.bf16 %v2180, %v2179
      %v2195 = vpack.c.bf16 %v2182, %v2181
      %v2196 = vpack.c.bf16 %v2184, %v2183
      %v2197 = vpack.c.bf16 %v2186, %v2185
      %v2198 = vpack.c.bf16 %v2188, %v2187
      %v2199 = vpack.c.bf16 %v2190, %v2189
      %v2200 = vpack.c.bf16 %v2192, %v2191
      %2201 = vrot.lane.b32.xlu0 %v343, 40
      %v2202 = vpop.permute.xlu0 %2201
      %2203 = vrot.lane.b32.xlu0 %v344, 40
      %v2204 = vpop.permute.xlu0 %2203
      %2205 = vrot.lane.b32.xlu0 %v345, 40
      %v2206 = vpop.permute.xlu0 %2205
      %2207 = vrot.lane.b32.xlu0 %v346, 40
      %v2208 = vpop.permute.xlu0 %2207
      %2209 = vrot.lane.b32.xlu0 %v347, 40
      %v2210 = vpop.permute.xlu0 %2209
      %2211 = vrot.lane.b32.xlu0 %v348, 40
      %v2212 = vpop.permute.xlu0 %2211
      %2213 = vrot.lane.b32.xlu0 %v349, 40
      %v2214 = vpop.permute.xlu0 %2213
      %2215 = vrot.lane.b32.xlu0 %v350, 40
      %v2216 = vpop.permute.xlu0 %2215
      %2225 = vmatprep.subr.bf16.mxu0 0
      %2226 = vmatpush1.bf16.msra.mxu0 %v2216
      %2227 = vmatprep.subr.bf16.mxu0 0
      %2228 = vmatpush1.bf16.msra.mxu0 %v2214
      %2229 = vmatprep.subr.bf16.mxu0 0
      %2230 = vmatpush1.bf16.msra.mxu0 %v2212
      %2231 = vmatprep.subr.bf16.mxu0 0
      %2232 = vmatpush1.bf16.msra.mxu0 %v2210
      %2233 = vmatprep.subr.bf16.mxu0 0
      %2234 = vmatpush1.bf16.msra.mxu0 %v2208
      %2235 = vmatprep.subr.bf16.mxu0 0
      %2236 = vmatpush1.bf16.msra.mxu0 %v2206
      %2237 = vmatprep.subr.bf16.mxu0 0
      %2238 = vmatpush1.bf16.msra.mxu0 %v2204
      %2239 = vmatprep.subr.bf16.mxu0 0
      %2240 = vmatpush1.bf16.msra.mxu0 %v2202
      %2241 = vmatprep.subr.bf16.mxu0 0
      %2242 = vmatpush2.bf16.msra.mxu0 0
      %2243 = vmatprep.subr.bf16.mxu0 0
      %2244 = vmatpush2.bf16.msra.mxu0 0
      %2245 = vmatprep.subr.bf16.mxu0 0
      %2246 = vmatpush2.bf16.msra.mxu0 0
      %2247 = vmatprep.subr.bf16.mxu0 0
      %2248 = vmatpush2.bf16.msra.mxu0 0
      %2249 = vmatprep.subr.bf16.mxu0 0
      %2250 = vmatpush2.bf16.msra.mxu0 0
      %2251 = vmatprep.subr.bf16.mxu0 0
      %2252 = vmatpush2.bf16.msra.mxu0 0
      %2253 = vmatprep.subr.bf16.mxu0 0
      %2254 = vmatpush2.bf16.msra.mxu0 0
      %2255 = vmatprep.subr.bf16.mxu0 0
      %2256 = vmatpush2.bf16.msra.mxu0 0
      %2257 = vmatprep.mubr.bf16.mxu0 0
      %2258 = vmatmul.mubr.bf16.gmra.mxu0 %v2193
      %v2259 = vpop.f32.mrf.mxu0
      %v2260 = vadd.f32 0.0, %v2259
      %v2261 = vpop.f32.mrf.mxu0
      %v2262 = vpop.f32.mrf.mxu0
      %v2263 = vadd.f32 0.0, %v2262
      %v2264 = vpop.f32.mrf.mxu0
      %2265 = vmatprep.mubr.bf16.mxu0 0
      %2266 = vmatmul.mubr.bf16.gmra.mxu0 %v2194
      %v2267 = vpop.f32.mrf.mxu0
      %v2268 = vadd.f32 0.0, %v2267
      %v2269 = vpop.f32.mrf.mxu0
      %v2270 = vpop.f32.mrf.mxu0
      %v2271 = vadd.f32 0.0, %v2270
      %v2272 = vpop.f32.mrf.mxu0
      %2273 = vmatprep.mubr.bf16.mxu0 0
      %2274 = vmatmul.mubr.bf16.gmra.mxu0 %v2195
      %v2275 = vpop.f32.mrf.mxu0
      %v2276 = vadd.f32 0.0, %v2275
      %v2277 = vpop.f32.mrf.mxu0
      %v2278 = vpop.f32.mrf.mxu0
      %v2279 = vadd.f32 0.0, %v2278
      %v2280 = vpop.f32.mrf.mxu0
      %2281 = vmatprep.mubr.bf16.mxu0 0
      %2282 = vmatmul.mubr.bf16.gmra.mxu0 %v2196
      %v2283 = vpop.f32.mrf.mxu0
      %v2284 = vadd.f32 0.0, %v2283
      %v2285 = vpop.f32.mrf.mxu0
      %v2286 = vpop.f32.mrf.mxu0
      %v2287 = vadd.f32 0.0, %v2286
      %v2288 = vpop.f32.mrf.mxu0
      %2289 = vmatprep.mubr.bf16.mxu0 0
      %2290 = vmatmul.mubr.bf16.gmra.mxu0 %v2197
      %v2291 = vpop.f32.mrf.mxu0
      %v2292 = vadd.f32 0.0, %v2291
      %v2293 = vpop.f32.mrf.mxu0
      %v2294 = vpop.f32.mrf.mxu0
      %v2295 = vadd.f32 0.0, %v2294
      %v2296 = vpop.f32.mrf.mxu0
      %2297 = vmatprep.mubr.bf16.mxu0 0
      %2298 = vmatmul.mubr.bf16.gmra.mxu0 %v2198
      %v2299 = vpop.f32.mrf.mxu0
      %v2300 = vadd.f32 0.0, %v2299
      %v2301 = vpop.f32.mrf.mxu0
      %v2302 = vpop.f32.mrf.mxu0
      %v2303 = vadd.f32 0.0, %v2302
      %v2304 = vpop.f32.mrf.mxu0
      %2305 = vmatprep.mubr.bf16.mxu0 0
      %2306 = vmatmul.mubr.bf16.gmra.mxu0 %v2199
      %v2307 = vpop.f32.mrf.mxu0
      %v2308 = vadd.f32 0.0, %v2307
      %v2309 = vpop.f32.mrf.mxu0
      %v2310 = vpop.f32.mrf.mxu0
      %v2311 = vadd.f32 0.0, %v2310
      %v2312 = vpop.f32.mrf.mxu0
      %2313 = vmatprep.mubr.bf16.mxu0 0
      %2314 = vmatmul.mubr.bf16.gmra.mxu0 %v2200
      %v2315 = vpop.f32.mrf.mxu0
      %v2316 = vadd.f32 0.0, %v2315
      %v2317 = vpop.f32.mrf.mxu0
      %v2318 = vpop.f32.mrf.mxu0
      %v2319 = vadd.f32 0.0, %v2318
      %v2320 = vpop.f32.mrf.mxu0
      %2321 = vdwg.mxu0
      %2338 = vrot.lane.b32.xlu0 %v2260, 24
      %v2339 = vpop.permute.xlu0 %2338
      %2340 = vrot.lane.b32.xlu0 %v2263, 24
      %v2341 = vpop.permute.xlu0 %2340
      %2342 = vrot.lane.b32.xlu0 %v2268, 24
      %v2343 = vpop.permute.xlu0 %2342
      %2344 = vrot.lane.b32.xlu0 %v2271, 24
      %v2345 = vpop.permute.xlu0 %2344
      %2346 = vrot.lane.b32.xlu0 %v2276, 24
      %v2347 = vpop.permute.xlu0 %2346
      %2348 = vrot.lane.b32.xlu0 %v2279, 24
      %v2349 = vpop.permute.xlu0 %2348
      %2350 = vrot.lane.b32.xlu0 %v2284, 24
      %v2351 = vpop.permute.xlu0 %2350
      %2352 = vrot.lane.b32.xlu0 %v2287, 24
      %v2353 = vpop.permute.xlu0 %2352
      %2354 = vrot.lane.b32.xlu0 %v2292, 24
      %v2355 = vpop.permute.xlu0 %2354
      %2356 = vrot.lane.b32.xlu0 %v2295, 24
      %v2357 = vpop.permute.xlu0 %2356
      %2358 = vrot.lane.b32.xlu0 %v2300, 24
      %v2359 = vpop.permute.xlu0 %2358
      %2360 = vrot.lane.b32.xlu0 %v2303, 24
      %v2361 = vpop.permute.xlu0 %2360
      %2362 = vrot.lane.b32.xlu0 %v2308, 24
      %v2363 = vpop.permute.xlu0 %2362
      %2364 = vrot.lane.b32.xlu0 %v2311, 24
      %v2365 = vpop.permute.xlu0 %2364
      %2366 = vrot.lane.b32.xlu0 %v2316, 24
      %v2367 = vpop.permute.xlu0 %2366
      %2368 = vrot.lane.b32.xlu0 %v2319, 24
      %v2369 = vpop.permute.xlu0 %2368
      %vm2386 = vcmask 261312
      %2387 = vst.msk [vmem:[#allocation2] sm:$0xff] %vm2386, %v2339
      %2388 = vst.msk [vmem:[#allocation2 + $0x8] sm:$0xff] %vm2386, %v2341
      %2389 = vst.msk [vmem:[#allocation2 + $0x10] sm:$0xff] %vm2386, %v2343
      %2390 = vst.msk [vmem:[#allocation2 + $0x18] sm:$0xff] %vm2386, %v2345
      %2391 = vst.msk [vmem:[#allocation2 + $0x20] sm:$0xff] %vm2386, %v2347
      %2392 = vst.msk [vmem:[#allocation2 + $0x28] sm:$0xff] %vm2386, %v2349
      %2393 = vst.msk [vmem:[#allocation2 + $0x30] sm:$0xff] %vm2386, %v2351
      %2394 = vst.msk [vmem:[#allocation2 + $0x38] sm:$0xff] %vm2386, %v2353
      %2395 = vst.msk [vmem:[#allocation2 + $0x40] sm:$0xff] %vm2386, %v2355
      %2396 = vst.msk [vmem:[#allocation2 + $0x48] sm:$0xff] %vm2386, %v2357
      %2397 = vst.msk [vmem:[#allocation2 + $0x50] sm:$0xff] %vm2386, %v2359
      %2398 = vst.msk [vmem:[#allocation2 + $0x58] sm:$0xff] %vm2386, %v2361
      %2399 = vst.msk [vmem:[#allocation2 + $0x60] sm:$0xff] %vm2386, %v2363
      %2400 = vst.msk [vmem:[#allocation2 + $0x68] sm:$0xff] %vm2386, %v2365
      %2401 = vst.msk [vmem:[#allocation2 + $0x70] sm:$0xff] %vm2386, %v2367
      %2402 = vst.msk [vmem:[#allocation2 + $0x78] sm:$0xff] %vm2386, %v2369
      %v2403 = vld [vmem:[#allocation2] sm:$0xff]
      %v2404 = vld [vmem:[#allocation2 + $0x8] sm:$0xff]
      %v2405 = vld [vmem:[#allocation2 + $0x10] sm:$0xff]
      %v2406 = vld [vmem:[#allocation2 + $0x18] sm:$0xff]
      %v2407 = vld [vmem:[#allocation2 + $0x20] sm:$0xff]
      %v2408 = vld [vmem:[#allocation2 + $0x28] sm:$0xff]
      %v2409 = vld [vmem:[#allocation2 + $0x30] sm:$0xff]
      %v2410 = vld [vmem:[#allocation2 + $0x38] sm:$0xff]
      %v2411 = vld [vmem:[#allocation2 + $0x40] sm:$0xff]
      %v2412 = vld [vmem:[#allocation2 + $0x48] sm:$0xff]
      %v2413 = vld [vmem:[#allocation2 + $0x50] sm:$0xff]
      %v2414 = vld [vmem:[#allocation2 + $0x58] sm:$0xff]
      %v2415 = vld [vmem:[#allocation2 + $0x60] sm:$0xff]
      %v2416 = vld [vmem:[#allocation2 + $0x68] sm:$0xff]
      %v2417 = vld [vmem:[#allocation2 + $0x70] sm:$0xff]
      %v2418 = vld [vmem:[#allocation2 + $0x78] sm:$0xff]
      %2419 = vst.msk [vmem:[%s143] sm:$0xff] %vm217, %v2403
      %2420 = vst.msk [vmem:[%s143 + $0x8] sm:$0xff] %vm217, %v2404
      %2421 = vst.msk [vmem:[%s143 + $0x10] sm:$0xff] %vm217, %v2405
      %2422 = vst.msk [vmem:[%s143 + $0x18] sm:$0xff] %vm217, %v2406
      %2423 = vst.msk [vmem:[%s143 + $0x20] sm:$0xff] %vm217, %v2407
      %2424 = vst.msk [vmem:[%s143 + $0x28] sm:$0xff] %vm217, %v2408
      %2425 = vst.msk [vmem:[%s143 + $0x30] sm:$0xff] %vm217, %v2409
      %2426 = vst.msk [vmem:[%s143 + $0x38] sm:$0xff] %vm217, %v2410
      %2427 = vst.msk [vmem:[%s143 + $0x40] sm:$0xff] %vm217, %v2411
      %2428 = vst.msk [vmem:[%s143 + $0x48] sm:$0xff] %vm217, %v2412
      %2429 = vst.msk [vmem:[%s143 + $0x50] sm:$0xff] %vm217, %v2413
      %2430 = vst.msk [vmem:[%s143 + $0x58] sm:$0xff] %vm217, %v2414
      %2431 = vst.msk [vmem:[%s143 + $0x60] sm:$0xff] %vm217, %v2415
      %2432 = vst.msk [vmem:[%s143 + $0x68] sm:$0xff] %vm217, %v2416
      %2433 = vst.msk [vmem:[%s143 + $0x70] sm:$0xff] %vm217, %v2417
      %2434 = vst.msk [vmem:[%s143 + $0x78] sm:$0xff] %vm217, %v2418
      %p2435 = scmp.lt.s32.totalorder %s13, 1
      %s2436 = scalar_select %p2435, %s13, 1
      %s2437 = smul.addr %s2436, 16
      %s2438 = smul.addr %s2437, 8
      %s2439 = scalar_lea.vmem %s2, %s2438
      // Predicated region
      $region29: #{tpu_custom_call.1} parent=27 // pred_check
        %p2440 = pneg %p78
      $region30: #{tpu_custom_call.1} parent=27 // pred_check_branch
        %2442 = sbr.rel (%p2440) target = $region32
      $region31: #{tpu_custom_call.1} parent=27 // pred_region
        _
      $region32: #{tpu_custom_call.1} parent=27 // pred_fallthru
        _
    $region28: #{tpu_custom_call.1} parent=5 // pred_fallthru
      _
    %p2443 = scmp.le.s32.totalorder 2, %s8
    // Predicated region
    $region33: #{tpu_custom_call.1} parent=5 // pred_check
      %p2444 = pneg %p2443
    $region34: #{tpu_custom_call.1} parent=5 // pred_check_branch
      %2446 = sbr.rel (%p2444) target = $region36
    $region35: #{tpu_custom_call.1} parent=5 // pred_region
      %s2447 = ssub.s32 %s8, 2
      // Predicated region
      $region37: #{tpu_custom_call.1} parent=35 // pred_check
        %p2448 = pneg %p84
      $region38: #{tpu_custom_call.1} parent=35 // pred_check_branch
        %2450 = sbr.rel (%p2448) target = $region40
      $region39: #{tpu_custom_call.1} parent=35 // pred_region
        %p2451 = scmp.lt.s32.totalorder %s14, 1
        %s2452 = scalar_select %p2451, %s14, 1
        %s2453 = smul.addr %s2452, 16
        %s2454 = smul.addr %s2453, 8
        %s2455 = scalar_lea.vmem %s2, %s2454
      $region40: #{tpu_custom_call.1} parent=35 // pred_fallthru
        _
    $region36: #{tpu_custom_call.1} parent=5 // pred_fallthru
      _
  $region6: #{tpu_custom_call.1} parent=0 // loop_footer
    %s12 = sadd.s32 1, %s8
  $region7: #{tpu_custom_call.1} parent=0 // loop_footer_branch
    %7 = sbr.rel target = $region3
  $region8: #{tpu_custom_call.1} parent=0 // loop_exit
    _

</llo_original>
